<compile_context>
chip_gen: v7x
topology: tpu7x:2x2x1
jax: 0.10.0
libtpu: 0.0.40
codegen_flags: <defaults>
</compile_context>

<pallas_src>
import functools

import jax
import jax.numpy as jnp
import numpy as np
from jax.experimental import pallas as pl
from jax.experimental.pallas import tpu as pltpu


def _slstm_tempatten_kernel(
    x_ref,        # (T*Bp, I)   time-major input, flattened over (T, Bp)
    wih1_ref,     # (I, 4H)
    b1_ref,       # (1, 4H)
    wfused_ref,   # (3H, 8H)    block-diag [[whh1,0],[0,wih2],[0,whh2]]
    b2_ref,       # (1, 4H)
    fcw_ref,      # (H, Cp)
    fcb_ref,      # (1, Cp)
    thr_ref,      # SMEM (2,)   [thr1, thr2]
    out_ref,      # (Bp, Cp)
    lhs_ref,      # VMEM scratch (Bp, 3H): lane windows [mem1 | spk1 | mem2]
    *, T, Bp, H, attn,
):
    f32 = jnp.float32
    H4 = 4 * H

    # ---- hoisted constants (broadcasts are NOT CSE'd -> do them once) ----
    thr1 = jnp.full((Bp, H), thr_ref[0], f32)
    thr2 = jnp.full((Bp, H), thr_ref[1], f32)
    b2 = b2_ref[...]

    # Lane map for the [i, f, g, o] gate block.  Single-tanh activation:
    #   act = tanh(g * s) * s + off   with  s = 1 on "g" lanes else 0.5,
    #                                       off = 0 on "g" lanes else 0.5.
    lane = jax.lax.broadcasted_iota(jnp.int32, (Bp, H4), 1)
    g_mask = (lane >= 2 * H) & (lane < 3 * H)
    act_s = jnp.where(g_mask, 1.0, 0.5).astype(f32)
    act_o = jnp.where(g_mask, 0.0, 0.5).astype(f32)

    def gate_act(g):
        t = jnp.tanh(g * act_s)          # one full-vreg EUP push per tile
        return t * act_s + act_o

    # ---- prologue: layer-1 input projection hoisted out of recurrence ----
    # one (T*Bp, I) x (I, 4H) matmul instead of T tiny ones on the serial path
    xg = (jnp.dot(x_ref[...], wih1_ref[...], preferred_element_type=f32)
          + b1_ref[...])                                       # (T*Bp, 4H)

    zeros_h = jnp.zeros((Bp, H), f32)
    c1, h1 = zeros_h, zeros_h            # layer-1 syn / mem
    c2, h2 = zeros_h, zeros_h            # layer-2 syn / mem
    acc = zeros_h
    g1_rec = jnp.zeros((Bp, H4), f32)    # mem1(t-1) @ whh1; zero since mem1=0

    lhs_ref[...] = jnp.zeros((Bp, 3 * H), f32)   # mem2 window starts at zero

    for t in range(T):      # fully unrolled: T is small and static
        # ---------------------- SLSTM layer 1 (step t) --------------------
        g1 = xg[t * Bp:(t + 1) * Bp, :] + g1_rec
        a1 = gate_act(g1)
        c1 = a1[:, H:2 * H] * c1 + a1[:, 0:H] * a1[:, 2 * H:3 * H]
        h1_lstm = a1[:, 3 * H:H4] * jnp.tanh(c1)
        # reset from PREVIOUS mem (reset_mechanism='subtract')
        m1 = jnp.where(h1 > thr1, h1_lstm - thr1, h1_lstm)
        spk1 = (m1 > thr1).astype(f32)
        h1 = m1

        # -------- fused recurrent matmul: ONE MXU push for both layers -----
        # LHS lane windows [m1 | spk1 | mem2(t-1)] against block-diag RHS:
        #   lanes 0:4H  -> m1 @ whh1               = layer-1 gates for t+1
        #   lanes 4H:8H -> spk1 @ wih2 + h2 @ whh2 = layer-2 gates for t
        lhs_ref[:, 0:H] = m1
        lhs_ref[:, H:2 * H] = spk1
        fused = jnp.dot(lhs_ref[...], wfused_ref[...],
                        preferred_element_type=f32)            # (Bp, 8H)
        g1_rec = fused[:, 0:H4]        # unused on last step; same push anyway

        # ---------------------- SLSTM layer 2 (step t) --------------------
        g2 = fused[:, H4:2 * H4] + b2
        a2 = gate_act(g2)
        c2 = a2[:, H:2 * H] * c2 + a2[:, 0:H] * a2[:, 2 * H:3 * H]
        h2_lstm = a2[:, 3 * H:H4] * jnp.tanh(c2)
        m2 = jnp.where(h2 > thr2, h2_lstm - thr2, h2_lstm)
        h2 = m2
        lhs_ref[:, 2 * H:3 * H] = m2   # feeds step t+1's fused matmul

        # temporal attenuation: running weighted sum of mem2 (weights baked)
        acc = acc + attn[t] * m2

    out_ref[...] = (jnp.dot(acc, fcw_ref[...], preferred_element_type=f32)
                    + fcb_ref[...])


def net_slstm_tempatten(x, params, attenuation_alpha=0.05):
    """x: (T, B, inputSize) float32 -> (B, numClasses) float32."""
    T, B, I = x.shape
    H = params["w_ih1"].shape[1] // 4
    C = params["fc_w"].shape[1]

    Bp = ((B + 7) // 8) * 8          # pad batch to f32 sublane multiple
    Cp = ((C + 127) // 128) * 128    # lane-dense output (avoid masked stores)

    if Bp != B:
        # Padded rows are zeros; with thr > 0 they never spike.  Batch entries
        # are independent so padded rows can never contaminate real rows; they
        # are sliced off below.  (If a future config uses thr <= 0 the padded
        # rows would spike, but still only affect themselves.)
        x = jnp.pad(x, ((0, 0), (0, Bp - B), (0, 0)))
    x2d = x.reshape(T * Bp, I)

    fcw = params["fc_w"]
    fcb = params["fc_b"]
    if Cp != C:
        fcw = jnp.pad(fcw, ((0, 0), (0, Cp - C)))
        fcb = jnp.pad(fcb, ((0, 0), (0, Cp - C)))

    # Block-diagonal fused recurrent weight, built once in the XLA wrapper
    # (free relative to the kernel):
    #   [mem1 | spk1 | mem2] (Bp,3H) @ wfused (3H,8H)
    #     cols 0:4H  <- whh1 (rows 0:H)
    #     cols 4H:8H <- wih2 (rows H:2H) + whh2 (rows 2H:3H)
    wfused = jnp.zeros((3 * H, 8 * H), jnp.float32)
    wfused = wfused.at[0:H, 0:4 * H].set(params["w_hh1"])
    wfused = wfused.at[H:2 * H, 4 * H:8 * H].set(params["w_ih2"])
    wfused = wfused.at[2 * H:3 * H, 4 * H:8 * H].set(params["w_hh2"])

    thr = jnp.stack([params["thr1"], params["thr2"]]).astype(jnp.float32)

    # Exactly the PyTorch forward's attenuation weights, baked as constants
    # (T and alpha are static at trace time).
    tidx = np.arange(T, 0, -1, dtype=np.float32)
    attn = np.exp(np.float32(-attenuation_alpha) * (tidx - np.float32(1.0)))
    attn = attn / attn.sum()
    attn = tuple(float(a) for a in attn)

    kernel = functools.partial(_slstm_tempatten_kernel,
                               T=T, Bp=Bp, H=H, attn=attn)

    vmem = pl.BlockSpec(memory_space=pltpu.MemorySpace.VMEM)
    smem = pl.BlockSpec(memory_space=pltpu.MemorySpace.SMEM)

    out = pl.pallas_call(
        kernel,
        out_shape=jax.ShapeDtypeStruct((Bp, Cp), jnp.float32),
        in_specs=[vmem] * 7 + [smem],
        out_specs=vmem,
        scratch_shapes=[pltpu.VMEM((Bp, 3 * H), jnp.float32)],
    )(x2d, params["w_ih1"], params["b1"], wfused, params["b2"],
      fcw, fcb, thr)

    return out[:B, :C]


def reference(x, params, attenuation_alpha=0.05):
    """Pure-JAX reference of the PyTorch forward (for validation)."""
    T, B, I = x.shape
    H = params["w_ih1"].shape[1] // 4
    hp = jax.lax.Precision.HIGHEST

    def cell(inp, h, c, wih, whh, b, thr):
        gates = (jnp.dot(inp, wih, precision=hp)
                 + jnp.dot(h, whh, precision=hp) + b)
        i_g = jax.nn.sigmoid(gates[:, :H])
        f_g = jax.nn.sigmoid(gates[:, H:2 * H])
        g_g = jnp.tanh(gates[:, 2 * H:3 * H])
        o_g = jax.nn.sigmoid(gates[:, 3 * H:])
        c_new = f_g * c + i_g * g_g
        h_new = o_g * jnp.tanh(c_new)
        reset = (h > thr).astype(jnp.float32)
        mem = h_new - reset * thr
        spk = (mem > thr).astype(jnp.float32)
        return spk, c_new, mem

    syn1 = mem1 = jnp.zeros((B, H), jnp.float32)
    syn2 = mem2 = jnp.zeros((B, H), jnp.float32)
    recs = []
    for t in range(T):
        spk1, syn1, mem1 = cell(x[t], mem1, syn1, params["w_ih1"],
                                params["w_hh1"], params["b1"], params["thr1"])
        _, syn2, mem2 = cell(spk1, mem2, syn2, params["w_ih2"],
                             params["w_hh2"], params["b2"], params["thr2"])
        recs.append(mem2)
    mem_rec = jnp.stack(recs)
    tidx = jnp.arange(T, 0, -1, dtype=jnp.float32)
    w = jnp.exp(-attenuation_alpha * (tidx - 1.0))
    w = w / jnp.sum(w)
    final = jnp.sum(mem_rec * w[:, None, None], axis=0)
    return jnp.dot(final, params["fc_w"], precision=hp) + params["fc_b"]


def make_params(key, input_size, hidden_size, num_classes):
    """Deterministic synthetic parameters (shapes from the module __init__)."""
    ks = jax.random.split(key, 10)
    k_lstm = 1.0 / np.sqrt(hidden_size)
    k_fc = 1.0 / np.sqrt(hidden_size)

    def u(k, shape, scale):
        return jax.random.uniform(k, shape, jnp.float32, -scale, scale)

    params = {
        # SLSTM1 (LSTMCell(input_size, hidden)), weights stored transposed
        "w_ih1": u(ks[0], (input_size, 4 * hidden_size), k_lstm),
        "w_hh1": u(ks[1], (hidden_size, 4 * hidden_size), k_lstm),
        "b1":    u(ks[2], (1, 4 * hidden_size), k_lstm),   # b_ih + b_hh folded
        # SLSTM2 (LSTMCell(hidden, hidden))
        "w_ih2": u(ks[3], (hidden_size, 4 * hidden_size), k_lstm),
        "w_hh2": u(ks[4], (hidden_size, 4 * hidden_size), k_lstm),
        "b2":    u(ks[5], (1, 4 * hidden_size), k_lstm),
        # fc (Linear(hidden, numClasses)), stored transposed
        "fc_w":  u(ks[6], (hidden_size, num_classes), k_fc),
        "fc_b":  u(ks[7], (1, num_classes), k_fc),
        # learn_threshold=True params; 0.25 so the spike/reset path is exercised
        "thr1": jnp.float32(0.25),
        "thr2": jnp.float32(0.25),
    }
    return params


if __name__ == "__main__":
    # small shapes consistent with the module: inputSize=14, hidden=32, classes=8
    T, B, I, H, C = 8, 4, 14, 32, 8
    alpha = 0.05

    key = jax.random.PRNGKey(0)
    kx, kp = jax.random.split(key)
    x = 2.0 * jax.random.normal(kx, (T, B, I), dtype=jnp.float32)
    params = make_params(kp, I, H, C)

    run = jax.jit(functools.partial(net_slstm_tempatten,
                                    attenuation_alpha=alpha))
    out = run(x, params)
    out = jax.block_until_ready(out)

    ref = jax.block_until_ready(reference(x, params, alpha))

    assert out.shape == (B, C), out.shape
    assert bool(jnp.all(jnp.isfinite(out)))
    np.testing.assert_allclose(np.asarray(out), np.asarray(ref),
                               rtol=1e-4, atol=1e-4)
    print("KERNEL_OK")
</pallas_src>

<mosaic_0001>
module attributes {stable_mosaic.version = 11 : i64} {
  func.func @_slstm_tempatten_kernel(%arg0: memref<64x14xf32, #tpu.memory_space<vmem>>, %arg1: memref<14x128xf32, #tpu.memory_space<vmem>>, %arg2: memref<1x128xf32, #tpu.memory_space<vmem>>, %arg3: memref<96x256xf32, #tpu.memory_space<vmem>>, %arg4: memref<1x128xf32, #tpu.memory_space<vmem>>, %arg5: memref<32x128xf32, #tpu.memory_space<vmem>>, %arg6: memref<1x128xf32, #tpu.memory_space<vmem>>, %arg7: memref<2xf32, #tpu.memory_space<smem>>, %arg8: memref<8x128xf32, #tpu.memory_space<vmem>>, %arg9: memref<8x96xf32, #tpu.memory_space<vmem>>) attributes {dimension_semantics = [], scalar_prefetch = 0 : i64, scratch_operands = 1 : i64, tpu.core_type = #tpu.core_type<tc>} {
    %c0 = arith.constant 0 : index
    %0 = memref.load %arg7[%c0] : memref<2xf32, #tpu.memory_space<smem>>
    %1 = vector.broadcast %0 : f32 to vector<8x32xf32>
    %c1 = arith.constant 1 : index
    %2 = memref.load %arg7[%c1] : memref<2xf32, #tpu.memory_space<smem>>
    %3 = vector.broadcast %2 : f32 to vector<8x32xf32>
    %c0_0 = arith.constant 0 : index
    %c0_1 = arith.constant 0 : index
    %4 = vector.load %arg4[%c0_0, %c0_1] : memref<1x128xf32, #tpu.memory_space<vmem>>, vector<1x128xf32>
    %5 = tpu.iota {dimensions = array<i32: 1>} : vector<8x128xi32>
    %c64_i32 = arith.constant 64 : i32
    %6 = vector.broadcast %c64_i32 : i32 to vector<8x128xi32>
    %7 = arith.cmpi sge, %5, %6 : vector<8x128xi32>
    %c96_i32 = arith.constant 96 : i32
    %8 = vector.broadcast %c96_i32 : i32 to vector<8x128xi32>
    %9 = arith.cmpi slt, %5, %8 : vector<8x128xi32>
    %10 = arith.andi %7, %9 : vector<8x128xi1>
    %cst = arith.constant 1.000000e+00 : f32
    %cst_2 = arith.constant 5.000000e-01 : f32
    %11 = vector.broadcast %cst : f32 to vector<8x128xf32>
    %12 = vector.broadcast %cst_2 : f32 to vector<8x128xf32>
    %13 = arith.select %10, %11, %12 : vector<8x128xi1>, vector<8x128xf32>
    %cst_3 = arith.constant 0.000000e+00 : f32
    %cst_4 = arith.constant 5.000000e-01 : f32
    %14 = vector.broadcast %cst_3 : f32 to vector<8x128xf32>
    %15 = vector.broadcast %cst_4 : f32 to vector<8x128xf32>
    %16 = arith.select %10, %14, %15 : vector<8x128xi1>, vector<8x128xf32>
    %c0_5 = arith.constant 0 : index
    %c0_6 = arith.constant 0 : index
    %17 = vector.load %arg0[%c0_5, %c0_6] : memref<64x14xf32, #tpu.memory_space<vmem>>, vector<64x14xf32>
    %c0_7 = arith.constant 0 : index
    %c0_8 = arith.constant 0 : index
    %18 = vector.load %arg1[%c0_7, %c0_8] : memref<14x128xf32, #tpu.memory_space<vmem>>, vector<14x128xf32>
    %cst_9 = arith.constant dense<0.000000e+00> : vector<64x128xf32>
    %19 = tpu.matmul %17, %18, %cst_9 {dimension_numbers = #tpu.dot_dimension_numbers<[1], [0], [0], [1], [0, 0, 1, 1], [], []>} : vector<64x14xf32>, vector<14x128xf32>, vector<64x128xf32> -> vector<64x128xf32>
    %c0_10 = arith.constant 0 : index
    %c0_11 = arith.constant 0 : index
    %20 = vector.load %arg2[%c0_10, %c0_11] : memref<1x128xf32, #tpu.memory_space<vmem>>, vector<1x128xf32>
    %21 = vector.broadcast %20 : vector<1x128xf32> to vector<64x128xf32>
    %22 = arith.addf %19, %21 : vector<64x128xf32>
    %cst_12 = arith.constant 0.000000e+00 : f32
    %23 = vector.broadcast %cst_12 : f32 to vector<8x32xf32>
    %cst_13 = arith.constant 0.000000e+00 : f32
    %24 = vector.broadcast %cst_13 : f32 to vector<8x128xf32>
    %cst_14 = arith.constant 0.000000e+00 : f32
    %25 = vector.broadcast %cst_14 : f32 to vector<8x96xf32>
    %c0_15 = arith.constant 0 : index
    %c0_16 = arith.constant 0 : index
    %26 = vector.load %arg9[%c0_15, %c0_16] : memref<8x96xf32, #tpu.memory_space<vmem>>, vector<8x96xf32>
    tpu.vector_store %arg9[%c0_15, %c0_16], %25 {strides = array<i32>} : memref<8x96xf32, #tpu.memory_space<vmem>>, vector<8x96xf32>,
    %27 = vector.extract_strided_slice %22 {offsets = [0, 0], sizes = [8, 128], strides = [1, 1]} : vector<64x128xf32> to vector<8x128xf32>
    %28 = arith.addf %27, %24 : vector<8x128xf32>
    %29 = arith.mulf %28, %13 : vector<8x128xf32>
    %30 = math.tanh %29 : vector<8x128xf32>
    %31 = arith.mulf %30, %13 : vector<8x128xf32>
    %32 = arith.addf %31, %16 : vector<8x128xf32>
    %33 = vector.extract_strided_slice %32 {offsets = [0, 32], sizes = [8, 32], strides = [1, 1]} : vector<8x128xf32> to vector<8x32xf32>
    %34 = arith.mulf %33, %23 : vector<8x32xf32>
    %35 = vector.extract_strided_slice %32 {offsets = [0, 0], sizes = [8, 32], strides = [1, 1]} : vector<8x128xf32> to vector<8x32xf32>
    %36 = vector.extract_strided_slice %32 {offsets = [0, 64], sizes = [8, 32], strides = [1, 1]} : vector<8x128xf32> to vector<8x32xf32>
    %37 = arith.mulf %35, %36 : vector<8x32xf32>
    %38 = arith.addf %34, %37 : vector<8x32xf32>
    %39 = vector.extract_strided_slice %32 {offsets = [0, 96], sizes = [8, 32], strides = [1, 1]} : vector<8x128xf32> to vector<8x32xf32>
    %40 = math.tanh %38 : vector<8x32xf32>
    %41 = arith.mulf %39, %40 : vector<8x32xf32>
    %42 = arith.cmpf ogt, %23, %1 : vector<8x32xf32>
    %43 = arith.subf %41, %1 : vector<8x32xf32>
    %44 = arith.select %42, %43, %41 : vector<8x32xi1>, vector<8x32xf32>
    %45 = arith.cmpf ogt, %44, %1 : vector<8x32xf32>
    %46 = arith.extui %45 : vector<8x32xi1> to vector<8x32xi32>
    %47 = arith.sitofp %46 : vector<8x32xi32> to vector<8x32xf32>
    %c0_17 = arith.constant 0 : index
    %c0_18 = arith.constant 0 : index
    %48 = vector.load %arg9[%c0_17, %c0_18] : memref<8x96xf32, #tpu.memory_space<vmem>>, vector<8x32xf32>
    tpu.vector_store %arg9[%c0_17, %c0_18], %44 {strides = array<i32>} : memref<8x96xf32, #tpu.memory_space<vmem>>, vector<8x32xf32>,
    %c0_19 = arith.constant 0 : index
    %c32 = arith.constant 32 : index
    %49 = vector.load %arg9[%c0_19, %c32] : memref<8x96xf32, #tpu.memory_space<vmem>>, vector<8x32xf32>
    tpu.vector_store %arg9[%c0_19, %c32], %47 {strides = array<i32>} : memref<8x96xf32, #tpu.memory_space<vmem>>, vector<8x32xf32>,
    %c0_20 = arith.constant 0 : index
    %c0_21 = arith.constant 0 : index
    %50 = vector.load %arg9[%c0_20, %c0_21] : memref<8x96xf32, #tpu.memory_space<vmem>>, vector<8x96xf32>
    %c0_22 = arith.constant 0 : index
    %c0_23 = arith.constant 0 : index
    %51 = vector.load %arg3[%c0_22, %c0_23] : memref<96x256xf32, #tpu.memory_space<vmem>>, vector<96x256xf32>
    %cst_24 = arith.constant dense<0.000000e+00> : vector<8x256xf32>
    %52 = tpu.matmul %50, %51, %cst_24 {dimension_numbers = #tpu.dot_dimension_numbers<[1], [0], [0], [1], [0, 0, 1, 1], [], []>} : vector<8x96xf32>, vector<96x256xf32>, vector<8x256xf32> -> vector<8x256xf32>
    %53 = vector.extract_strided_slice %52 {offsets = [0, 0], sizes = [8, 128], strides = [1, 1]} : vector<8x256xf32> to vector<8x128xf32>
    %54 = vector.extract_strided_slice %52 {offsets = [0, 128], sizes = [8, 128], strides = [1, 1]} : vector<8x256xf32> to vector<8x128xf32>
    %55 = vector.broadcast %4 : vector<1x128xf32> to vector<8x128xf32>
    %56 = arith.addf %54, %55 : vector<8x128xf32>
    %57 = arith.mulf %56, %13 : vector<8x128xf32>
    %58 = math.tanh %57 : vector<8x128xf32>
    %59 = arith.mulf %58, %13 : vector<8x128xf32>
    %60 = arith.addf %59, %16 : vector<8x128xf32>
    %61 = vector.extract_strided_slice %60 {offsets = [0, 32], sizes = [8, 32], strides = [1, 1]} : vector<8x128xf32> to vector<8x32xf32>
    %62 = arith.mulf %61, %23 : vector<8x32xf32>
    %63 = vector.extract_strided_slice %60 {offsets = [0, 0], sizes = [8, 32], strides = [1, 1]} : vector<8x128xf32> to vector<8x32xf32>
    %64 = vector.extract_strided_slice %60 {offsets = [0, 64], sizes = [8, 32], strides = [1, 1]} : vector<8x128xf32> to vector<8x32xf32>
    %65 = arith.mulf %63, %64 : vector<8x32xf32>
    %66 = arith.addf %62, %65 : vector<8x32xf32>
    %67 = vector.extract_strided_slice %60 {offsets = [0, 96], sizes = [8, 32], strides = [1, 1]} : vector<8x128xf32> to vector<8x32xf32>
    %68 = math.tanh %66 : vector<8x32xf32>
    %69 = arith.mulf %67, %68 : vector<8x32xf32>
    %70 = arith.cmpf ogt, %23, %3 : vector<8x32xf32>
    %71 = arith.subf %69, %3 : vector<8x32xf32>
    %72 = arith.select %70, %71, %69 : vector<8x32xi1>, vector<8x32xf32>
    %c0_25 = arith.constant 0 : index
    %c64 = arith.constant 64 : index
    %73 = vector.load %arg9[%c0_25, %c64] : memref<8x96xf32, #tpu.memory_space<vmem>>, vector<8x32xf32>
    tpu.vector_store %arg9[%c0_25, %c64], %72 {strides = array<i32>} : memref<8x96xf32, #tpu.memory_space<vmem>>, vector<8x32xf32>,
    %cst_26 = arith.constant 0.104246698 : f32
    %74 = vector.broadcast %cst_26 : f32 to vector<8x32xf32>
    %75 = arith.mulf %74, %72 : vector<8x32xf32>
    %76 = arith.addf %23, %75 : vector<8x32xf32>
    %77 = vector.extract_strided_slice %22 {offsets = [8, 0], sizes = [8, 128], strides = [1, 1]} : vector<64x128xf32> to vector<8x128xf32>
    %78 = arith.addf %77, %53 : vector<8x128xf32>
    %79 = arith.mulf %78, %13 : vector<8x128xf32>
    %80 = math.tanh %79 : vector<8x128xf32>
    %81 = arith.mulf %80, %13 : vector<8x128xf32>
    %82 = arith.addf %81, %16 : vector<8x128xf32>
    %83 = vector.extract_strided_slice %82 {offsets = [0, 32], sizes = [8, 32], strides = [1, 1]} : vector<8x128xf32> to vector<8x32xf32>
    %84 = arith.mulf %83, %38 : vector<8x32xf32>
    %85 = vector.extract_strided_slice %82 {offsets = [0, 0], sizes = [8, 32], strides = [1, 1]} : vector<8x128xf32> to vector<8x32xf32>
    %86 = vector.extract_strided_slice %82 {offsets = [0, 64], sizes = [8, 32], strides = [1, 1]} : vector<8x128xf32> to vector<8x32xf32>
    %87 = arith.mulf %85, %86 : vector<8x32xf32>
    %88 = arith.addf %84, %87 : vector<8x32xf32>
    %89 = vector.extract_strided_slice %82 {offsets = [0, 96], sizes = [8, 32], strides = [1, 1]} : vector<8x128xf32> to vector<8x32xf32>
    %90 = math.tanh %88 : vector<8x32xf32>
    %91 = arith.mulf %89, %90 : vector<8x32xf32>
    %92 = arith.cmpf ogt, %44, %1 : vector<8x32xf32>
    %93 = arith.subf %91, %1 : vector<8x32xf32>
    %94 = arith.select %92, %93, %91 : vector<8x32xi1>, vector<8x32xf32>
    %95 = arith.cmpf ogt, %94, %1 : vector<8x32xf32>
    %96 = arith.extui %95 : vector<8x32xi1> to vector<8x32xi32>
    %97 = arith.sitofp %96 : vector<8x32xi32> to vector<8x32xf32>
    %c0_27 = arith.constant 0 : index
    %c0_28 = arith.constant 0 : index
    %98 = vector.load %arg9[%c0_27, %c0_28] : memref<8x96xf32, #tpu.memory_space<vmem>>, vector<8x32xf32>
    tpu.vector_store %arg9[%c0_27, %c0_28], %94 {strides = array<i32>} : memref<8x96xf32, #tpu.memory_space<vmem>>, vector<8x32xf32>,
    %c0_29 = arith.constant 0 : index
    %c32_30 = arith.constant 32 : index
    %99 = vector.load %arg9[%c0_29, %c32_30] : memref<8x96xf32, #tpu.memory_space<vmem>>, vector<8x32xf32>
    tpu.vector_store %arg9[%c0_29, %c32_30], %97 {strides = array<i32>} : memref<8x96xf32, #tpu.memory_space<vmem>>, vector<8x32xf32>,
    %c0_31 = arith.constant 0 : index
    %c0_32 = arith.constant 0 : index
    %100 = vector.load %arg9[%c0_31, %c0_32] : memref<8x96xf32, #tpu.memory_space<vmem>>, vector<8x96xf32>
    %c0_33 = arith.constant 0 : index
    %c0_34 = arith.constant 0 : index
    %101 = vector.load %arg3[%c0_33, %c0_34] : memref<96x256xf32, #tpu.memory_space<vmem>>, vector<96x256xf32>
    %cst_35 = arith.constant dense<0.000000e+00> : vector<8x256xf32>
    %102 = tpu.matmul %100, %101, %cst_35 {dimension_numbers = #tpu.dot_dimension_numbers<[1], [0], [0], [1], [0, 0, 1, 1], [], []>} : vector<8x96xf32>, vector<96x256xf32>, vector<8x256xf32> -> vector<8x256xf32>
    %103 = vector.extract_strided_slice %102 {offsets = [0, 0], sizes = [8, 128], strides = [1, 1]} : vector<8x256xf32> to vector<8x128xf32>
    %104 = vector.extract_strided_slice %102 {offsets = [0, 128], sizes = [8, 128], strides = [1, 1]} : vector<8x256xf32> to vector<8x128xf32>
    %105 = vector.broadcast %4 : vector<1x128xf32> to vector<8x128xf32>
    %106 = arith.addf %104, %105 : vector<8x128xf32>
    %107 = arith.mulf %106, %13 : vector<8x128xf32>
    %108 = math.tanh %107 : vector<8x128xf32>
    %109 = arith.mulf %108, %13 : vector<8x128xf32>
    %110 = arith.addf %109, %16 : vector<8x128xf32>
    %111 = vector.extract_strided_slice %110 {offsets = [0, 32], sizes = [8, 32], strides = [1, 1]} : vector<8x128xf32> to vector<8x32xf32>
    %112 = arith.mulf %111, %66 : vector<8x32xf32>
    %113 = vector.extract_strided_slice %110 {offsets = [0, 0], sizes = [8, 32], strides = [1, 1]} : vector<8x128xf32> to vector<8x32xf32>
    %114 = vector.extract_strided_slice %110 {offsets = [0, 64], sizes = [8, 32], strides = [1, 1]} : vector<8x128xf32> to vector<8x32xf32>
    %115 = arith.mulf %113, %114 : vector<8x32xf32>
    %116 = arith.addf %112, %115 : vector<8x32xf32>
    %117 = vector.extract_strided_slice %110 {offsets = [0, 96], sizes = [8, 32], strides = [1, 1]} : vector<8x128xf32> to vector<8x32xf32>
    %118 = math.tanh %116 : vector<8x32xf32>
    %119 = arith.mulf %117, %118 : vector<8x32xf32>
    %120 = arith.cmpf ogt, %72, %3 : vector<8x32xf32>
    %121 = arith.subf %119, %3 : vector<8x32xf32>
    %122 = arith.select %120, %121, %119 : vector<8x32xi1>, vector<8x32xf32>
    %c0_36 = arith.constant 0 : index
    %c64_37 = arith.constant 64 : index
    %123 = vector.load %arg9[%c0_36, %c64_37] : memref<8x96xf32, #tpu.memory_space<vmem>>, vector<8x32xf32>
    tpu.vector_store %arg9[%c0_36, %c64_37], %122 {strides = array<i32>} : memref<8x96xf32, #tpu.memory_space<vmem>>, vector<8x32xf32>,
    %cst_38 = arith.constant 0.109591536 : f32
    %124 = vector.broadcast %cst_38 : f32 to vector<8x32xf32>
    %125 = arith.mulf %124, %122 : vector<8x32xf32>
    %126 = arith.addf %76, %125 : vector<8x32xf32>
    %127 = vector.extract_strided_slice %22 {offsets = [16, 0], sizes = [8, 128], strides = [1, 1]} : vector<64x128xf32> to vector<8x128xf32>
    %128 = arith.addf %127, %103 : vector<8x128xf32>
    %129 = arith.mulf %128, %13 : vector<8x128xf32>
    %130 = math.tanh %129 : vector<8x128xf32>
    %131 = arith.mulf %130, %13 : vector<8x128xf32>
    %132 = arith.addf %131, %16 : vector<8x128xf32>
    %133 = vector.extract_strided_slice %132 {offsets = [0, 32], sizes = [8, 32], strides = [1, 1]} : vector<8x128xf32> to vector<8x32xf32>
    %134 = arith.mulf %133, %88 : vector<8x32xf32>
    %135 = vector.extract_strided_slice %132 {offsets = [0, 0], sizes = [8, 32], strides = [1, 1]} : vector<8x128xf32> to vector<8x32xf32>
    %136 = vector.extract_strided_slice %132 {offsets = [0, 64], sizes = [8, 32], strides = [1, 1]} : vector<8x128xf32> to vector<8x32xf32>
    %137 = arith.mulf %135, %136 : vector<8x32xf32>
    %138 = arith.addf %134, %137 : vector<8x32xf32>
    %139 = vector.extract_strided_slice %132 {offsets = [0, 96], sizes = [8, 32], strides = [1, 1]} : vector<8x128xf32> to vector<8x32xf32>
    %140 = math.tanh %138 : vector<8x32xf32>
    %141 = arith.mulf %139, %140 : vector<8x32xf32>
    %142 = arith.cmpf ogt, %94, %1 : vector<8x32xf32>
    %143 = arith.subf %141, %1 : vector<8x32xf32>
    %144 = arith.select %142, %143, %141 : vector<8x32xi1>, vector<8x32xf32>
    %145 = arith.cmpf ogt, %144, %1 : vector<8x32xf32>
    %146 = arith.extui %145 : vector<8x32xi1> to vector<8x32xi32>
    %147 = arith.sitofp %146 : vector<8x32xi32> to vector<8x32xf32>
    %c0_39 = arith.constant 0 : index
    %c0_40 = arith.constant 0 : index
    %148 = vector.load %arg9[%c0_39, %c0_40] : memref<8x96xf32, #tpu.memory_space<vmem>>, vector<8x32xf32>
    tpu.vector_store %arg9[%c0_39, %c0_40], %144 {strides = array<i32>} : memref<8x96xf32, #tpu.memory_space<vmem>>, vector<8x32xf32>,
    %c0_41 = arith.constant 0 : index
    %c32_42 = arith.constant 32 : index
    %149 = vector.load %arg9[%c0_41, %c32_42] : memref<8x96xf32, #tpu.memory_space<vmem>>, vector<8x32xf32>
    tpu.vector_store %arg9[%c0_41, %c32_42], %147 {strides = array<i32>} : memref<8x96xf32, #tpu.memory_space<vmem>>, vector<8x32xf32>,
    %c0_43 = arith.constant 0 : index
    %c0_44 = arith.constant 0 : index
    %150 = vector.load %arg9[%c0_43, %c0_44] : memref<8x96xf32, #tpu.memory_space<vmem>>, vector<8x96xf32>
    %c0_45 = arith.constant 0 : index
    %c0_46 = arith.constant 0 : index
    %151 = vector.load %arg3[%c0_45, %c0_46] : memref<96x256xf32, #tpu.memory_space<vmem>>, vector<96x256xf32>
    %cst_47 = arith.constant dense<0.000000e+00> : vector<8x256xf32>
    %152 = tpu.matmul %150, %151, %cst_47 {dimension_numbers = #tpu.dot_dimension_numbers<[1], [0], [0], [1], [0, 0, 1, 1], [], []>} : vector<8x96xf32>, vector<96x256xf32>, vector<8x256xf32> -> vector<8x256xf32>
    %153 = vector.extract_strided_slice %152 {offsets = [0, 0], sizes = [8, 128], strides = [1, 1]} : vector<8x256xf32> to vector<8x128xf32>
    %154 = vector.extract_strided_slice %152 {offsets = [0, 128], sizes = [8, 128], strides = [1, 1]} : vector<8x256xf32> to vector<8x128xf32>
    %155 = vector.broadcast %4 : vector<1x128xf32> to vector<8x128xf32>
    %156 = arith.addf %154, %155 : vector<8x128xf32>
    %157 = arith.mulf %156, %13 : vector<8x128xf32>
    %158 = math.tanh %157 : vector<8x128xf32>
    %159 = arith.mulf %158, %13 : vector<8x128xf32>
    %160 = arith.addf %159, %16 : vector<8x128xf32>
    %161 = vector.extract_strided_slice %160 {offsets = [0, 32], sizes = [8, 32], strides = [1, 1]} : vector<8x128xf32> to vector<8x32xf32>
    %162 = arith.mulf %161, %116 : vector<8x32xf32>
    %163 = vector.extract_strided_slice %160 {offsets = [0, 0], sizes = [8, 32], strides = [1, 1]} : vector<8x128xf32> to vector<8x32xf32>
    %164 = vector.extract_strided_slice %160 {offsets = [0, 64], sizes = [8, 32], strides = [1, 1]} : vector<8x128xf32> to vector<8x32xf32>
    %165 = arith.mulf %163, %164 : vector<8x32xf32>
    %166 = arith.addf %162, %165 : vector<8x32xf32>
    %167 = vector.extract_strided_slice %160 {offsets = [0, 96], sizes = [8, 32], strides = [1, 1]} : vector<8x128xf32> to vector<8x32xf32>
    %168 = math.tanh %166 : vector<8x32xf32>
    %169 = arith.mulf %167, %168 : vector<8x32xf32>
    %170 = arith.cmpf ogt, %122, %3 : vector<8x32xf32>
    %171 = arith.subf %169, %3 : vector<8x32xf32>
    %172 = arith.select %170, %171, %169 : vector<8x32xi1>, vector<8x32xf32>
    %c0_48 = arith.constant 0 : index
    %c64_49 = arith.constant 64 : index
    %173 = vector.load %arg9[%c0_48, %c64_49] : memref<8x96xf32, #tpu.memory_space<vmem>>, vector<8x32xf32>
    tpu.vector_store %arg9[%c0_48, %c64_49], %172 {strides = array<i32>} : memref<8x96xf32, #tpu.memory_space<vmem>>, vector<8x32xf32>,
    %cst_50 = arith.constant 0.115210406 : f32
    %174 = vector.broadcast %cst_50 : f32 to vector<8x32xf32>
    %175 = arith.mulf %174, %172 : vector<8x32xf32>
    %176 = arith.addf %126, %175 : vector<8x32xf32>
    %177 = vector.extract_strided_slice %22 {offsets = [24, 0], sizes = [8, 128], strides = [1, 1]} : vector<64x128xf32> to vector<8x128xf32>
    %178 = arith.addf %177, %153 : vector<8x128xf32>
    %179 = arith.mulf %178, %13 : vector<8x128xf32>
    %180 = math.tanh %179 : vector<8x128xf32>
    %181 = arith.mulf %180, %13 : vector<8x128xf32>
    %182 = arith.addf %181, %16 : vector<8x128xf32>
    %183 = vector.extract_strided_slice %182 {offsets = [0, 32], sizes = [8, 32], strides = [1, 1]} : vector<8x128xf32> to vector<8x32xf32>
    %184 = arith.mulf %183, %138 : vector<8x32xf32>
    %185 = vector.extract_strided_slice %182 {offsets = [0, 0], sizes = [8, 32], strides = [1, 1]} : vector<8x128xf32> to vector<8x32xf32>
    %186 = vector.extract_strided_slice %182 {offsets = [0, 64], sizes = [8, 32], strides = [1, 1]} : vector<8x128xf32> to vector<8x32xf32>
    %187 = arith.mulf %185, %186 : vector<8x32xf32>
    %188 = arith.addf %184, %187 : vector<8x32xf32>
    %189 = vector.extract_strided_slice %182 {offsets = [0, 96], sizes = [8, 32], strides = [1, 1]} : vector<8x128xf32> to vector<8x32xf32>
    %190 = math.tanh %188 : vector<8x32xf32>
    %191 = arith.mulf %189, %190 : vector<8x32xf32>
    %192 = arith.cmpf ogt, %144, %1 : vector<8x32xf32>
    %193 = arith.subf %191, %1 : vector<8x32xf32>
    %194 = arith.select %192, %193, %191 : vector<8x32xi1>, vector<8x32xf32>
    %195 = arith.cmpf ogt, %194, %1 : vector<8x32xf32>
    %196 = arith.extui %195 : vector<8x32xi1> to vector<8x32xi32>
    %197 = arith.sitofp %196 : vector<8x32xi32> to vector<8x32xf32>
    %c0_51 = arith.constant 0 : index
    %c0_52 = arith.constant 0 : index
    %198 = vector.load %arg9[%c0_51, %c0_52] : memref<8x96xf32, #tpu.memory_space<vmem>>, vector<8x32xf32>
    tpu.vector_store %arg9[%c0_51, %c0_52], %194 {strides = array<i32>} : memref<8x96xf32, #tpu.memory_space<vmem>>, vector<8x32xf32>,
    %c0_53 = arith.constant 0 : index
    %c32_54 = arith.constant 32 : index
    %199 = vector.load %arg9[%c0_53, %c32_54] : memref<8x96xf32, #tpu.memory_space<vmem>>, vector<8x32xf32>
    tpu.vector_store %arg9[%c0_53, %c32_54], %197 {strides = array<i32>} : memref<8x96xf32, #tpu.memory_space<vmem>>, vector<8x32xf32>,
    %c0_55 = arith.constant 0 : index
    %c0_56 = arith.constant 0 : index
    %200 = vector.load %arg9[%c0_55, %c0_56] : memref<8x96xf32, #tpu.memory_space<vmem>>, vector<8x96xf32>
    %c0_57 = arith.constant 0 : index
    %c0_58 = arith.constant 0 : index
    %201 = vector.load %arg3[%c0_57, %c0_58] : memref<96x256xf32, #tpu.memory_space<vmem>>, vector<96x256xf32>
    %cst_59 = arith.constant dense<0.000000e+00> : vector<8x256xf32>
    %202 = tpu.matmul %200, %201, %cst_59 {dimension_numbers = #tpu.dot_dimension_numbers<[1], [0], [0], [1], [0, 0, 1, 1], [], []>} : vector<8x96xf32>, vector<96x256xf32>, vector<8x256xf32> -> vector<8x256xf32>
    %203 = vector.extract_strided_slice %202 {offsets = [0, 0], sizes = [8, 128], strides = [1, 1]} : vector<8x256xf32> to vector<8x128xf32>
    %204 = vector.extract_strided_slice %202 {offsets = [0, 128], sizes = [8, 128], strides = [1, 1]} : vector<8x256xf32> to vector<8x128xf32>
    %205 = vector.broadcast %4 : vector<1x128xf32> to vector<8x128xf32>
    %206 = arith.addf %204, %205 : vector<8x128xf32>
    %207 = arith.mulf %206, %13 : vector<8x128xf32>
    %208 = math.tanh %207 : vector<8x128xf32>
    %209 = arith.mulf %208, %13 : vector<8x128xf32>
    %210 = arith.addf %209, %16 : vector<8x128xf32>
    %211 = vector.extract_strided_slice %210 {offsets = [0, 32], sizes = [8, 32], strides = [1, 1]} : vector<8x128xf32> to vector<8x32xf32>
    %212 = arith.mulf %211, %166 : vector<8x32xf32>
    %213 = vector.extract_strided_slice %210 {offsets = [0, 0], sizes = [8, 32], strides = [1, 1]} : vector<8x128xf32> to vector<8x32xf32>
    %214 = vector.extract_strided_slice %210 {offsets = [0, 64], sizes = [8, 32], strides = [1, 1]} : vector<8x128xf32> to vector<8x32xf32>
    %215 = arith.mulf %213, %214 : vector<8x32xf32>
    %216 = arith.addf %212, %215 : vector<8x32xf32>
    %217 = vector.extract_strided_slice %210 {offsets = [0, 96], sizes = [8, 32], strides = [1, 1]} : vector<8x128xf32> to vector<8x32xf32>
    %218 = math.tanh %216 : vector<8x32xf32>
    %219 = arith.mulf %217, %218 : vector<8x32xf32>
    %220 = arith.cmpf ogt, %172, %3 : vector<8x32xf32>
    %221 = arith.subf %219, %3 : vector<8x32xf32>
    %222 = arith.select %220, %221, %219 : vector<8x32xi1>, vector<8x32xf32>
    %c0_60 = arith.constant 0 : index
    %c64_61 = arith.constant 64 : index
    %223 = vector.load %arg9[%c0_60, %c64_61] : memref<8x96xf32, #tpu.memory_space<vmem>>, vector<8x32xf32>
    tpu.vector_store %arg9[%c0_60, %c64_61], %222 {strides = array<i32>} : memref<8x96xf32, #tpu.memory_space<vmem>>, vector<8x32xf32>,
    %cst_62 = arith.constant 0.121117376 : f32
    %224 = vector.broadcast %cst_62 : f32 to vector<8x32xf32>
    %225 = arith.mulf %224, %222 : vector<8x32xf32>
    %226 = arith.addf %176, %225 : vector<8x32xf32>
    %227 = vector.extract_strided_slice %22 {offsets = [32, 0], sizes = [8, 128], strides = [1, 1]} : vector<64x128xf32> to vector<8x128xf32>
    %228 = arith.addf %227, %203 : vector<8x128xf32>
    %229 = arith.mulf %228, %13 : vector<8x128xf32>
    %230 = math.tanh %229 : vector<8x128xf32>
    %231 = arith.mulf %230, %13 : vector<8x128xf32>
    %232 = arith.addf %231, %16 : vector<8x128xf32>
    %233 = vector.extract_strided_slice %232 {offsets = [0, 32], sizes = [8, 32], strides = [1, 1]} : vector<8x128xf32> to vector<8x32xf32>
    %234 = arith.mulf %233, %188 : vector<8x32xf32>
    %235 = vector.extract_strided_slice %232 {offsets = [0, 0], sizes = [8, 32], strides = [1, 1]} : vector<8x128xf32> to vector<8x32xf32>
    %236 = vector.extract_strided_slice %232 {offsets = [0, 64], sizes = [8, 32], strides = [1, 1]} : vector<8x128xf32> to vector<8x32xf32>
    %237 = arith.mulf %235, %236 : vector<8x32xf32>
    %238 = arith.addf %234, %237 : vector<8x32xf32>
    %239 = vector.extract_strided_slice %232 {offsets = [0, 96], sizes = [8, 32], strides = [1, 1]} : vector<8x128xf32> to vector<8x32xf32>
    %240 = math.tanh %238 : vector<8x32xf32>
    %241 = arith.mulf %239, %240 : vector<8x32xf32>
    %242 = arith.cmpf ogt, %194, %1 : vector<8x32xf32>
    %243 = arith.subf %241, %1 : vector<8x32xf32>
    %244 = arith.select %242, %243, %241 : vector<8x32xi1>, vector<8x32xf32>
    %245 = arith.cmpf ogt, %244, %1 : vector<8x32xf32>
    %246 = arith.extui %245 : vector<8x32xi1> to vector<8x32xi32>
    %247 = arith.sitofp %246 : vector<8x32xi32> to vector<8x32xf32>
    %c0_63 = arith.constant 0 : index
    %c0_64 = arith.constant 0 : index
    %248 = vector.load %arg9[%c0_63, %c0_64] : memref<8x96xf32, #tpu.memory_space<vmem>>, vector<8x32xf32>
    tpu.vector_store %arg9[%c0_63, %c0_64], %244 {strides = array<i32>} : memref<8x96xf32, #tpu.memory_space<vmem>>, vector<8x32xf32>,
    %c0_65 = arith.constant 0 : index
    %c32_66 = arith.constant 32 : index
    %249 = vector.load %arg9[%c0_65, %c32_66] : memref<8x96xf32, #tpu.memory_space<vmem>>, vector<8x32xf32>
    tpu.vector_store %arg9[%c0_65, %c32_66], %247 {strides = array<i32>} : memref<8x96xf32, #tpu.memory_space<vmem>>, vector<8x32xf32>,
    %c0_67 = arith.constant 0 : index
    %c0_68 = arith.constant 0 : index
    %250 = vector.load %arg9[%c0_67, %c0_68] : memref<8x96xf32, #tpu.memory_space<vmem>>, vector<8x96xf32>
    %c0_69 = arith.constant 0 : index
    %c0_70 = arith.constant 0 : index
    %251 = vector.load %arg3[%c0_69, %c0_70] : memref<96x256xf32, #tpu.memory_space<vmem>>, vector<96x256xf32>
    %cst_71 = arith.constant dense<0.000000e+00> : vector<8x256xf32>
    %252 = tpu.matmul %250, %251, %cst_71 {dimension_numbers = #tpu.dot_dimension_numbers<[1], [0], [0], [1], [0, 0, 1, 1], [], []>} : vector<8x96xf32>, vector<96x256xf32>, vector<8x256xf32> -> vector<8x256xf32>
    %253 = vector.extract_strided_slice %252 {offsets = [0, 0], sizes = [8, 128], strides = [1, 1]} : vector<8x256xf32> to vector<8x128xf32>
    %254 = vector.extract_strided_slice %252 {offsets = [0, 128], sizes = [8, 128], strides = [1, 1]} : vector<8x256xf32> to vector<8x128xf32>
    %255 = vector.broadcast %4 : vector<1x128xf32> to vector<8x128xf32>
    %256 = arith.addf %254, %255 : vector<8x128xf32>
    %257 = arith.mulf %256, %13 : vector<8x128xf32>
    %258 = math.tanh %257 : vector<8x128xf32>
    %259 = arith.mulf %258, %13 : vector<8x128xf32>
    %260 = arith.addf %259, %16 : vector<8x128xf32>
    %261 = vector.extract_strided_slice %260 {offsets = [0, 32], sizes = [8, 32], strides = [1, 1]} : vector<8x128xf32> to vector<8x32xf32>
    %262 = arith.mulf %261, %216 : vector<8x32xf32>
    %263 = vector.extract_strided_slice %260 {offsets = [0, 0], sizes = [8, 32], strides = [1, 1]} : vector<8x128xf32> to vector<8x32xf32>
    %264 = vector.extract_strided_slice %260 {offsets = [0, 64], sizes = [8, 32], strides = [1, 1]} : vector<8x128xf32> to vector<8x32xf32>
    %265 = arith.mulf %263, %264 : vector<8x32xf32>
    %266 = arith.addf %262, %265 : vector<8x32xf32>
    %267 = vector.extract_strided_slice %260 {offsets = [0, 96], sizes = [8, 32], strides = [1, 1]} : vector<8x128xf32> to vector<8x32xf32>
    %268 = math.tanh %266 : vector<8x32xf32>
    %269 = arith.mulf %267, %268 : vector<8x32xf32>
    %270 = arith.cmpf ogt, %222, %3 : vector<8x32xf32>
    %271 = arith.subf %269, %3 : vector<8x32xf32>
    %272 = arith.select %270, %271, %269 : vector<8x32xi1>, vector<8x32xf32>
    %c0_72 = arith.constant 0 : index
    %c64_73 = arith.constant 64 : index
    %273 = vector.load %arg9[%c0_72, %c64_73] : memref<8x96xf32, #tpu.memory_space<vmem>>, vector<8x32xf32>
    tpu.vector_store %arg9[%c0_72, %c64_73], %272 {strides = array<i32>} : memref<8x96xf32, #tpu.memory_space<vmem>>, vector<8x32xf32>,
    %cst_74 = arith.constant 0.127327189 : f32
    %274 = vector.broadcast %cst_74 : f32 to vector<8x32xf32>
    %275 = arith.mulf %274, %272 : vector<8x32xf32>
    %276 = arith.addf %226, %275 : vector<8x32xf32>
    %277 = vector.extract_strided_slice %22 {offsets = [40, 0], sizes = [8, 128], strides = [1, 1]} : vector<64x128xf32> to vector<8x128xf32>
    %278 = arith.addf %277, %253 : vector<8x128xf32>
    %279 = arith.mulf %278, %13 : vector<8x128xf32>
    %280 = math.tanh %279 : vector<8x128xf32>
    %281 = arith.mulf %280, %13 : vector<8x128xf32>
    %282 = arith.addf %281, %16 : vector<8x128xf32>
    %283 = vector.extract_strided_slice %282 {offsets = [0, 32], sizes = [8, 32], strides = [1, 1]} : vector<8x128xf32> to vector<8x32xf32>
    %284 = arith.mulf %283, %238 : vector<8x32xf32>
    %285 = vector.extract_strided_slice %282 {offsets = [0, 0], sizes = [8, 32], strides = [1, 1]} : vector<8x128xf32> to vector<8x32xf32>
    %286 = vector.extract_strided_slice %282 {offsets = [0, 64], sizes = [8, 32], strides = [1, 1]} : vector<8x128xf32> to vector<8x32xf32>
    %287 = arith.mulf %285, %286 : vector<8x32xf32>
    %288 = arith.addf %284, %287 : vector<8x32xf32>
    %289 = vector.extract_strided_slice %282 {offsets = [0, 96], sizes = [8, 32], strides = [1, 1]} : vector<8x128xf32> to vector<8x32xf32>
    %290 = math.tanh %288 : vector<8x32xf32>
    %291 = arith.mulf %289, %290 : vector<8x32xf32>
    %292 = arith.cmpf ogt, %244, %1 : vector<8x32xf32>
    %293 = arith.subf %291, %1 : vector<8x32xf32>
    %294 = arith.select %292, %293, %291 : vector<8x32xi1>, vector<8x32xf32>
    %295 = arith.cmpf ogt, %294, %1 : vector<8x32xf32>
    %296 = arith.extui %295 : vector<8x32xi1> to vector<8x32xi32>
    %297 = arith.sitofp %296 : vector<8x32xi32> to vector<8x32xf32>
    %c0_75 = arith.constant 0 : index
    %c0_76 = arith.constant 0 : index
    %298 = vector.load %arg9[%c0_75, %c0_76] : memref<8x96xf32, #tpu.memory_space<vmem>>, vector<8x32xf32>
    tpu.vector_store %arg9[%c0_75, %c0_76], %294 {strides = array<i32>} : memref<8x96xf32, #tpu.memory_space<vmem>>, vector<8x32xf32>,
    %c0_77 = arith.constant 0 : index
    %c32_78 = arith.constant 32 : index
    %299 = vector.load %arg9[%c0_77, %c32_78] : memref<8x96xf32, #tpu.memory_space<vmem>>, vector<8x32xf32>
    tpu.vector_store %arg9[%c0_77, %c32_78], %297 {strides = array<i32>} : memref<8x96xf32, #tpu.memory_space<vmem>>, vector<8x32xf32>,
    %c0_79 = arith.constant 0 : index
    %c0_80 = arith.constant 0 : index
    %300 = vector.load %arg9[%c0_79, %c0_80] : memref<8x96xf32, #tpu.memory_space<vmem>>, vector<8x96xf32>
    %c0_81 = arith.constant 0 : index
    %c0_82 = arith.constant 0 : index
    %301 = vector.load %arg3[%c0_81, %c0_82] : memref<96x256xf32, #tpu.memory_space<vmem>>, vector<96x256xf32>
    %cst_83 = arith.constant dense<0.000000e+00> : vector<8x256xf32>
    %302 = tpu.matmul %300, %301, %cst_83 {dimension_numbers = #tpu.dot_dimension_numbers<[1], [0], [0], [1], [0, 0, 1, 1], [], []>} : vector<8x96xf32>, vector<96x256xf32>, vector<8x256xf32> -> vector<8x256xf32>
    %303 = vector.extract_strided_slice %302 {offsets = [0, 0], sizes = [8, 128], strides = [1, 1]} : vector<8x256xf32> to vector<8x128xf32>
    %304 = vector.extract_strided_slice %302 {offsets = [0, 128], sizes = [8, 128], strides = [1, 1]} : vector<8x256xf32> to vector<8x128xf32>
    %305 = vector.broadcast %4 : vector<1x128xf32> to vector<8x128xf32>
    %306 = arith.addf %304, %305 : vector<8x128xf32>
    %307 = arith.mulf %306, %13 : vector<8x128xf32>
    %308 = math.tanh %307 : vector<8x128xf32>
    %309 = arith.mulf %308, %13 : vector<8x128xf32>
    %310 = arith.addf %309, %16 : vector<8x128xf32>
    %311 = vector.extract_strided_slice %310 {offsets = [0, 32], sizes = [8, 32], strides = [1, 1]} : vector<8x128xf32> to vector<8x32xf32>
    %312 = arith.mulf %311, %266 : vector<8x32xf32>
    %313 = vector.extract_strided_slice %310 {offsets = [0, 0], sizes = [8, 32], strides = [1, 1]} : vector<8x128xf32> to vector<8x32xf32>
    %314 = vector.extract_strided_slice %310 {offsets = [0, 64], sizes = [8, 32], strides = [1, 1]} : vector<8x128xf32> to vector<8x32xf32>
    %315 = arith.mulf %313, %314 : vector<8x32xf32>
    %316 = arith.addf %312, %315 : vector<8x32xf32>
    %317 = vector.extract_strided_slice %310 {offsets = [0, 96], sizes = [8, 32], strides = [1, 1]} : vector<8x128xf32> to vector<8x32xf32>
    %318 = math.tanh %316 : vector<8x32xf32>
    %319 = arith.mulf %317, %318 : vector<8x32xf32>
    %320 = arith.cmpf ogt, %272, %3 : vector<8x32xf32>
    %321 = arith.subf %319, %3 : vector<8x32xf32>
    %322 = arith.select %320, %321, %319 : vector<8x32xi1>, vector<8x32xf32>
    %c0_84 = arith.constant 0 : index
    %c64_85 = arith.constant 64 : index
    %323 = vector.load %arg9[%c0_84, %c64_85] : memref<8x96xf32, #tpu.memory_space<vmem>>, vector<8x32xf32>
    tpu.vector_store %arg9[%c0_84, %c64_85], %322 {strides = array<i32>} : memref<8x96xf32, #tpu.memory_space<vmem>>, vector<8x32xf32>,
    %cst_86 = arith.constant 0.133855402 : f32
    %324 = vector.broadcast %cst_86 : f32 to vector<8x32xf32>
    %325 = arith.mulf %324, %322 : vector<8x32xf32>
    %326 = arith.addf %276, %325 : vector<8x32xf32>
    %327 = vector.extract_strided_slice %22 {offsets = [48, 0], sizes = [8, 128], strides = [1, 1]} : vector<64x128xf32> to vector<8x128xf32>
    %328 = arith.addf %327, %303 : vector<8x128xf32>
    %329 = arith.mulf %328, %13 : vector<8x128xf32>
    %330 = math.tanh %329 : vector<8x128xf32>
    %331 = arith.mulf %330, %13 : vector<8x128xf32>
    %332 = arith.addf %331, %16 : vector<8x128xf32>
    %333 = vector.extract_strided_slice %332 {offsets = [0, 32], sizes = [8, 32], strides = [1, 1]} : vector<8x128xf32> to vector<8x32xf32>
    %334 = arith.mulf %333, %288 : vector<8x32xf32>
    %335 = vector.extract_strided_slice %332 {offsets = [0, 0], sizes = [8, 32], strides = [1, 1]} : vector<8x128xf32> to vector<8x32xf32>
    %336 = vector.extract_strided_slice %332 {offsets = [0, 64], sizes = [8, 32], strides = [1, 1]} : vector<8x128xf32> to vector<8x32xf32>
    %337 = arith.mulf %335, %336 : vector<8x32xf32>
    %338 = arith.addf %334, %337 : vector<8x32xf32>
    %339 = vector.extract_strided_slice %332 {offsets = [0, 96], sizes = [8, 32], strides = [1, 1]} : vector<8x128xf32> to vector<8x32xf32>
    %340 = math.tanh %338 : vector<8x32xf32>
    %341 = arith.mulf %339, %340 : vector<8x32xf32>
    %342 = arith.cmpf ogt, %294, %1 : vector<8x32xf32>
    %343 = arith.subf %341, %1 : vector<8x32xf32>
    %344 = arith.select %342, %343, %341 : vector<8x32xi1>, vector<8x32xf32>
    %345 = arith.cmpf ogt, %344, %1 : vector<8x32xf32>
    %346 = arith.extui %345 : vector<8x32xi1> to vector<8x32xi32>
    %347 = arith.sitofp %346 : vector<8x32xi32> to vector<8x32xf32>
    %c0_87 = arith.constant 0 : index
    %c0_88 = arith.constant 0 : index
    %348 = vector.load %arg9[%c0_87, %c0_88] : memref<8x96xf32, #tpu.memory_space<vmem>>, vector<8x32xf32>
    tpu.vector_store %arg9[%c0_87, %c0_88], %344 {strides = array<i32>} : memref<8x96xf32, #tpu.memory_space<vmem>>, vector<8x32xf32>,
    %c0_89 = arith.constant 0 : index
    %c32_90 = arith.constant 32 : index
    %349 = vector.load %arg9[%c0_89, %c32_90] : memref<8x96xf32, #tpu.memory_space<vmem>>, vector<8x32xf32>
    tpu.vector_store %arg9[%c0_89, %c32_90], %347 {strides = array<i32>} : memref<8x96xf32, #tpu.memory_space<vmem>>, vector<8x32xf32>,
    %c0_91 = arith.constant 0 : index
    %c0_92 = arith.constant 0 : index
    %350 = vector.load %arg9[%c0_91, %c0_92] : memref<8x96xf32, #tpu.memory_space<vmem>>, vector<8x96xf32>
    %c0_93 = arith.constant 0 : index
    %c0_94 = arith.constant 0 : index
    %351 = vector.load %arg3[%c0_93, %c0_94] : memref<96x256xf32, #tpu.memory_space<vmem>>, vector<96x256xf32>
    %cst_95 = arith.constant dense<0.000000e+00> : vector<8x256xf32>
    %352 = tpu.matmul %350, %351, %cst_95 {dimension_numbers = #tpu.dot_dimension_numbers<[1], [0], [0], [1], [0, 0, 1, 1], [], []>} : vector<8x96xf32>, vector<96x256xf32>, vector<8x256xf32> -> vector<8x256xf32>
    %353 = vector.extract_strided_slice %352 {offsets = [0, 0], sizes = [8, 128], strides = [1, 1]} : vector<8x256xf32> to vector<8x128xf32>
    %354 = vector.extract_strided_slice %352 {offsets = [0, 128], sizes = [8, 128], strides = [1, 1]} : vector<8x256xf32> to vector<8x128xf32>
    %355 = vector.broadcast %4 : vector<1x128xf32> to vector<8x128xf32>
    %356 = arith.addf %354, %355 : vector<8x128xf32>
    %357 = arith.mulf %356, %13 : vector<8x128xf32>
    %358 = math.tanh %357 : vector<8x128xf32>
    %359 = arith.mulf %358, %13 : vector<8x128xf32>
    %360 = arith.addf %359, %16 : vector<8x128xf32>
    %361 = vector.extract_strided_slice %360 {offsets = [0, 32], sizes = [8, 32], strides = [1, 1]} : vector<8x128xf32> to vector<8x32xf32>
    %362 = arith.mulf %361, %316 : vector<8x32xf32>
    %363 = vector.extract_strided_slice %360 {offsets = [0, 0], sizes = [8, 32], strides = [1, 1]} : vector<8x128xf32> to vector<8x32xf32>
    %364 = vector.extract_strided_slice %360 {offsets = [0, 64], sizes = [8, 32], strides = [1, 1]} : vector<8x128xf32> to vector<8x32xf32>
    %365 = arith.mulf %363, %364 : vector<8x32xf32>
    %366 = arith.addf %362, %365 : vector<8x32xf32>
    %367 = vector.extract_strided_slice %360 {offsets = [0, 96], sizes = [8, 32], strides = [1, 1]} : vector<8x128xf32> to vector<8x32xf32>
    %368 = math.tanh %366 : vector<8x32xf32>
    %369 = arith.mulf %367, %368 : vector<8x32xf32>
    %370 = arith.cmpf ogt, %322, %3 : vector<8x32xf32>
    %371 = arith.subf %369, %3 : vector<8x32xf32>
    %372 = arith.select %370, %371, %369 : vector<8x32xi1>, vector<8x32xf32>
    %c0_96 = arith.constant 0 : index
    %c64_97 = arith.constant 64 : index
    %373 = vector.load %arg9[%c0_96, %c64_97] : memref<8x96xf32, #tpu.memory_space<vmem>>, vector<8x32xf32>
    tpu.vector_store %arg9[%c0_96, %c64_97], %372 {strides = array<i32>} : memref<8x96xf32, #tpu.memory_space<vmem>>, vector<8x32xf32>,
    %cst_98 = arith.constant 0.140718311 : f32
    %374 = vector.broadcast %cst_98 : f32 to vector<8x32xf32>
    %375 = arith.mulf %374, %372 : vector<8x32xf32>
    %376 = arith.addf %326, %375 : vector<8x32xf32>
    %377 = vector.extract_strided_slice %22 {offsets = [56, 0], sizes = [8, 128], strides = [1, 1]} : vector<64x128xf32> to vector<8x128xf32>
    %378 = arith.addf %377, %353 : vector<8x128xf32>
    %379 = arith.mulf %378, %13 : vector<8x128xf32>
    %380 = math.tanh %379 : vector<8x128xf32>
    %381 = arith.mulf %380, %13 : vector<8x128xf32>
    %382 = arith.addf %381, %16 : vector<8x128xf32>
    %383 = vector.extract_strided_slice %382 {offsets = [0, 32], sizes = [8, 32], strides = [1, 1]} : vector<8x128xf32> to vector<8x32xf32>
    %384 = arith.mulf %383, %338 : vector<8x32xf32>
    %385 = vector.extract_strided_slice %382 {offsets = [0, 0], sizes = [8, 32], strides = [1, 1]} : vector<8x128xf32> to vector<8x32xf32>
    %386 = vector.extract_strided_slice %382 {offsets = [0, 64], sizes = [8, 32], strides = [1, 1]} : vector<8x128xf32> to vector<8x32xf32>
    %387 = arith.mulf %385, %386 : vector<8x32xf32>
    %388 = arith.addf %384, %387 : vector<8x32xf32>
    %389 = vector.extract_strided_slice %382 {offsets = [0, 96], sizes = [8, 32], strides = [1, 1]} : vector<8x128xf32> to vector<8x32xf32>
    %390 = math.tanh %388 : vector<8x32xf32>
    %391 = arith.mulf %389, %390 : vector<8x32xf32>
    %392 = arith.cmpf ogt, %344, %1 : vector<8x32xf32>
    %393 = arith.subf %391, %1 : vector<8x32xf32>
    %394 = arith.select %392, %393, %391 : vector<8x32xi1>, vector<8x32xf32>
    %395 = arith.cmpf ogt, %394, %1 : vector<8x32xf32>
    %396 = arith.extui %395 : vector<8x32xi1> to vector<8x32xi32>
    %397 = arith.sitofp %396 : vector<8x32xi32> to vector<8x32xf32>
    %c0_99 = arith.constant 0 : index
    %c0_100 = arith.constant 0 : index
    %398 = vector.load %arg9[%c0_99, %c0_100] : memref<8x96xf32, #tpu.memory_space<vmem>>, vector<8x32xf32>
    tpu.vector_store %arg9[%c0_99, %c0_100], %394 {strides = array<i32>} : memref<8x96xf32, #tpu.memory_space<vmem>>, vector<8x32xf32>,
    %c0_101 = arith.constant 0 : index
    %c32_102 = arith.constant 32 : index
    %399 = vector.load %arg9[%c0_101, %c32_102] : memref<8x96xf32, #tpu.memory_space<vmem>>, vector<8x32xf32>
    tpu.vector_store %arg9[%c0_101, %c32_102], %397 {strides = array<i32>} : memref<8x96xf32, #tpu.memory_space<vmem>>, vector<8x32xf32>,
    %c0_103 = arith.constant 0 : index
    %c0_104 = arith.constant 0 : index
    %400 = vector.load %arg9[%c0_103, %c0_104] : memref<8x96xf32, #tpu.memory_space<vmem>>, vector<8x96xf32>
    %c0_105 = arith.constant 0 : index
    %c0_106 = arith.constant 0 : index
    %401 = vector.load %arg3[%c0_105, %c0_106] : memref<96x256xf32, #tpu.memory_space<vmem>>, vector<96x256xf32>
    %cst_107 = arith.constant dense<0.000000e+00> : vector<8x256xf32>
    %402 = tpu.matmul %400, %401, %cst_107 {dimension_numbers = #tpu.dot_dimension_numbers<[1], [0], [0], [1], [0, 0, 1, 1], [], []>} : vector<8x96xf32>, vector<96x256xf32>, vector<8x256xf32> -> vector<8x256xf32>
    %403 = vector.extract_strided_slice %402 {offsets = [0, 128], sizes = [8, 128], strides = [1, 1]} : vector<8x256xf32> to vector<8x128xf32>
    %404 = vector.broadcast %4 : vector<1x128xf32> to vector<8x128xf32>
    %405 = arith.addf %403, %404 : vector<8x128xf32>
    %406 = arith.mulf %405, %13 : vector<8x128xf32>
    %407 = math.tanh %406 : vector<8x128xf32>
    %408 = arith.mulf %407, %13 : vector<8x128xf32>
    %409 = arith.addf %408, %16 : vector<8x128xf32>
    %410 = vector.extract_strided_slice %409 {offsets = [0, 32], sizes = [8, 32], strides = [1, 1]} : vector<8x128xf32> to vector<8x32xf32>
    %411 = arith.mulf %410, %366 : vector<8x32xf32>
    %412 = vector.extract_strided_slice %409 {offsets = [0, 0], sizes = [8, 32], strides = [1, 1]} : vector<8x128xf32> to vector<8x32xf32>
    %413 = vector.extract_strided_slice %409 {offsets = [0, 64], sizes = [8, 32], strides = [1, 1]} : vector<8x128xf32> to vector<8x32xf32>
    %414 = arith.mulf %412, %413 : vector<8x32xf32>
    %415 = arith.addf %411, %414 : vector<8x32xf32>
    %416 = vector.extract_strided_slice %409 {offsets = [0, 96], sizes = [8, 32], strides = [1, 1]} : vector<8x128xf32> to vector<8x32xf32>
    %417 = math.tanh %415 : vector<8x32xf32>
    %418 = arith.mulf %416, %417 : vector<8x32xf32>
    %419 = arith.cmpf ogt, %372, %3 : vector<8x32xf32>
    %420 = arith.subf %418, %3 : vector<8x32xf32>
    %421 = arith.select %419, %420, %418 : vector<8x32xi1>, vector<8x32xf32>
    %c0_108 = arith.constant 0 : index
    %c64_109 = arith.constant 64 : index
    %422 = vector.load %arg9[%c0_108, %c64_109] : memref<8x96xf32, #tpu.memory_space<vmem>>, vector<8x32xf32>
    tpu.vector_store %arg9[%c0_108, %c64_109], %421 {strides = array<i32>} : memref<8x96xf32, #tpu.memory_space<vmem>>, vector<8x32xf32>,
    %cst_110 = arith.constant 0.147933096 : f32
    %423 = vector.broadcast %cst_110 : f32 to vector<8x32xf32>
    %424 = arith.mulf %423, %421 : vector<8x32xf32>
    %425 = arith.addf %376, %424 : vector<8x32xf32>
    %c0_111 = arith.constant 0 : index
    %c0_112 = arith.constant 0 : index
    %426 = vector.load %arg5[%c0_111, %c0_112] : memref<32x128xf32, #tpu.memory_space<vmem>>, vector<32x128xf32>
    %cst_113 = arith.constant dense<0.000000e+00> : vector<8x128xf32>
    %427 = tpu.matmul %425, %426, %cst_113 {dimension_numbers = #tpu.dot_dimension_numbers<[1], [0], [0], [1], [0, 0, 1, 1], [], []>} : vector<8x32xf32>, vector<32x128xf32>, vector<8x128xf32> -> vector<8x128xf32>
    %c0_114 = arith.constant 0 : index
    %c0_115 = arith.constant 0 : index
    %428 = vector.load %arg6[%c0_114, %c0_115] : memref<1x128xf32, #tpu.memory_space<vmem>>, vector<1x128xf32>
    %429 = vector.broadcast %428 : vector<1x128xf32> to vector<8x128xf32>
    %430 = arith.addf %427, %429 : vector<8x128xf32>
    %c0_116 = arith.constant 0 : index
    %c0_117 = arith.constant 0 : index
    %431 = vector.load %arg8[%c0_116, %c0_117] : memref<8x128xf32, #tpu.memory_space<vmem>>, vector<8x128xf32>
    tpu.vector_store %arg8[%c0_116, %c0_117], %430 {strides = array<i32>} : memref<8x128xf32, #tpu.memory_space<vmem>>, vector<8x128xf32>,
    return
  }
}

</mosaic_0001>

<llo_original>
// kernel: net_slstm_tempatten.1
$region0: #{net_slstm_tempatten.1}
  #allocation0 [shape = 'u32[]', space=smem, size = 0x4, offset = 0x4, fixed_abs, tag = 'smem constant byte address 0x4 - core index']
  #allocation1 [shape = 'u32[144,128]{1,0:T(1,128)}', space=vmem, size = 0x12000, scoped, tag = 'internal scratch']
  #allocation2 [shape = 'f32[8,96]{1,0:T(8,128)}', space=vmem, size = 0x1000, scoped, tag = 'scratch operand']
  %s0 = inlined_call_operand.vmem [shape: f32[64,14], index: 0, kind: input, shape index: {}]
  %s1 = inlined_call_operand.vmem [shape: f32[14,128], index: 1, kind: input, shape index: {}]
  %s2 = inlined_call_operand.vmem [shape: f32[1,128], index: 2, kind: input, shape index: {}]
  %s3 = inlined_call_operand.vmem [shape: f32[96,256], index: 3, kind: input, shape index: {}]
  %s4 = inlined_call_operand.vmem [shape: f32[1,128], index: 4, kind: input, shape index: {}]
  %s5 = inlined_call_operand.vmem [shape: f32[32,128], index: 5, kind: input, shape index: {}]
  %s6 = inlined_call_operand.vmem [shape: f32[1,128], index: 6, kind: input, shape index: {}]
  %s7 = inlined_call_operand.vmem [shape: f32[2], index: 7, kind: input, shape index: {}]
  %s8 = inlined_call_operand.vmem [shape: f32[8,128], index: 8, kind: output, shape index: {}]
  %s9 = sld [smem:[#allocation0]]
  $region46: #{net_slstm_tempatten.1} parent=0
    _
  %s11 = ssub.s32 1, %s9
  %s12 = scalar_select 0, %s11, %s9
  $region1: #{net_slstm_tempatten.1} parent=0
    #allocation3 [shape = 'u8[512]{0}', space=smem, size = 0x200, scoped, tag = 'input window, operand 7, single buffered']
    #allocation4 [shape = 's32[1]{0}', space=sflag, size = 0x4, scoped, tag = 'scoped memory for net_slstm_tempatten.1']
    %13 = vsyncpa [#allocation4], 0
    // Predicated region
    $region2: #{net_slstm_tempatten.1} parent=1 // pred_check
      _
    $region3: #{net_slstm_tempatten.1} parent=1 // pred_check_branch
      %15 = sbr.rel (0) target = $region5
    $region4: #{net_slstm_tempatten.1} parent=1 // pred_region
      _
    $region5: #{net_slstm_tempatten.1} parent=1 // pred_fallthru
      _
    // Predicated region
    $region6: #{net_slstm_tempatten.1} parent=1 // pred_check
      _
    $region7: #{net_slstm_tempatten.1} parent=1 // pred_check_branch
      %17 = sbr.rel (0) target = $region9
    $region8: #{net_slstm_tempatten.1} parent=1 // pred_region
      _
    $region9: #{net_slstm_tempatten.1} parent=1 // pred_fallthru
      _
    // Predicated region
    $region10: #{net_slstm_tempatten.1} parent=1 // pred_check
      _
    $region11: #{net_slstm_tempatten.1} parent=1 // pred_check_branch
      %19 = sbr.rel (0) target = $region13
    $region12: #{net_slstm_tempatten.1} parent=1 // pred_region
      _
    $region13: #{net_slstm_tempatten.1} parent=1 // pred_fallthru
      _
    // Predicated region
    $region14: #{net_slstm_tempatten.1} parent=1 // pred_check
      _
    $region15: #{net_slstm_tempatten.1} parent=1 // pred_check_branch
      %21 = sbr.rel (0) target = $region17
    $region16: #{net_slstm_tempatten.1} parent=1 // pred_region
      _
    $region17: #{net_slstm_tempatten.1} parent=1 // pred_fallthru
      _
    // Predicated region
    $region18: #{net_slstm_tempatten.1} parent=1 // pred_check
      _
    $region19: #{net_slstm_tempatten.1} parent=1 // pred_check_branch
      %23 = sbr.rel (0) target = $region21
    $region20: #{net_slstm_tempatten.1} parent=1 // pred_region
      _
    $region21: #{net_slstm_tempatten.1} parent=1 // pred_fallthru
      _
    // Predicated region
    $region22: #{net_slstm_tempatten.1} parent=1 // pred_check
      _
    $region23: #{net_slstm_tempatten.1} parent=1 // pred_check_branch
      %25 = sbr.rel (0) target = $region25
    $region24: #{net_slstm_tempatten.1} parent=1 // pred_region
      _
    $region25: #{net_slstm_tempatten.1} parent=1 // pred_fallthru
      _
    // Predicated region
    $region26: #{net_slstm_tempatten.1} parent=1 // pred_check
      _
    $region27: #{net_slstm_tempatten.1} parent=1 // pred_check_branch
      %27 = sbr.rel (0) target = $region29
    $region28: #{net_slstm_tempatten.1} parent=1 // pred_region
      _
    $region29: #{net_slstm_tempatten.1} parent=1 // pred_fallthru
      _
    // Predicated region
    $region30: #{net_slstm_tempatten.1} parent=1 // pred_check
      _
    $region31: #{net_slstm_tempatten.1} parent=1 // pred_check_branch
      %29 = sbr.rel (0) target = $region33
    $region32: #{net_slstm_tempatten.1} parent=1 // pred_region
      %s31 = ssub.s32 16, 16
      %32 = vsyncadd [#allocation4], %s31
      %s34 = sshll.u32 %s7, 4
      %s35 = int_to_ptr.vmem [resolvable:$true] %s34
      %37 = dma.vmem_to_smem %s35, 16, [#allocation3], [#allocation4]
    $region33: #{net_slstm_tempatten.1} parent=1 // pred_fallthru
      _
    // Predicated region
    $region34: #{net_slstm_tempatten.1} parent=1 // pred_check
      _
    $region35: #{net_slstm_tempatten.1} parent=1 // pred_check_branch
      %39 = sbr.rel (0) target = $region37
    $region36: #{net_slstm_tempatten.1} parent=1 // pred_region
      %40 = dma.done [#allocation4], 16
    $region37: #{net_slstm_tempatten.1} parent=1 // pred_fallthru
      _
    %41 = sfence
    %s42 = sld [smem:[#allocation3]]
    %v43 = vstv %s42
    %s44 = sld [smem:[#allocation3 + $0x1]]
    %v45 = vstv %s44
    %v46 = vld [vmem:[%s4] sm:$0x1]
    %v47 = vlaneseq
    %v48 = vand.u32 %v47, 127
    %vm49 = vcmp.ge.s32.totalorder %v48, 64
    %vm50 = vcmp.lt.s32.totalorder %v48, 96
    %vm51 = vmand %vm49, %vm50
    %v52 = vsel %vm51, 1.0, 0.5
    %v53 = vsel %vm51, 0.0, 0.5
    %v54 = vld [vmem:[%s0] sm:$0xff]
    %v55 = vld [vmem:[%s0 + $0x8] sm:$0xff]
    %v56 = vld [vmem:[%s0 + $0x10] sm:$0xff]
    %v57 = vld [vmem:[%s0 + $0x18] sm:$0xff]
    %v58 = vld [vmem:[%s0 + $0x20] sm:$0xff]
    %v59 = vld [vmem:[%s0 + $0x28] sm:$0xff]
    %v60 = vld [vmem:[%s0 + $0x30] sm:$0xff]
    %v61 = vld [vmem:[%s0 + $0x38] sm:$0xff]
    %v62 = vld [vmem:[%s1] sm:$0xff]
    %v63 = vld [vmem:[%s1 + $0x8] sm:$0x3f]
    %v64 = vld [vmem:[%s2] sm:$0x1]
    %v66 = vlaneseq
    %v67 = vshrl.u32 %v66, 7
    %v68 = vsub.s32 0, %v67
    %v69 = vrot.slane %v64, %v68
    %vm71 = vcmask 113664
    %v73 = vsel %vm71, %v54, 0
    %v76 = vsel %vm71, %v55, 0
    %v79 = vsel %vm71, %v56, 0
    %v82 = vsel %vm71, %v57, 0
    %v85 = vsel %vm71, %v58, 0
    %v88 = vsel %vm71, %v59, 0
    %v91 = vsel %vm71, %v60, 0
    %v94 = vsel %vm71, %v61, 0
    %vm96 = vcmask 1045504
    %v98 = vsel %vm96, %v63, 0
    %100 = vmatprep.subr.mxu0 0.0
    %101 = vmatpush1.msra.mxu0 %v62
    %102 = vmatprep.subr.mxu0 0.0
    %103 = vmatpush1.msra.mxu0 %v98
    %104 = vmatprep.subr.mxu0 0.0
    %105 = vmatpush1.msra.mxu0 0.0
    %106 = vmatprep.subr.mxu0 0.0
    %107 = vmatpush1.msra.mxu0 0.0
    %108 = vmatprep.subr.mxu0 0.0
    %109 = vmatpush1.msra.mxu0 0.0
    %110 = vmatprep.subr.mxu0 0.0
    %111 = vmatpush1.msra.mxu0 0.0
    %112 = vmatprep.subr.mxu0 0.0
    %113 = vmatpush1.msra.mxu0 0.0
    %114 = vmatprep.subr.mxu0 0.0
    %115 = vmatpush1.msra.mxu0 0.0
    %116 = vmatprep.subr.mxu0 0.0
    %117 = vmatpush1.msra.mxu0 0.0
    %118 = vmatprep.subr.mxu0 0.0
    %119 = vmatpush1.msra.mxu0 0.0
    %120 = vmatprep.subr.mxu0 0.0
    %121 = vmatpush1.msra.mxu0 0.0
    %122 = vmatprep.subr.mxu0 0.0
    %123 = vmatpush1.msra.mxu0 0.0
    %124 = vmatprep.subr.mxu0 0.0
    %125 = vmatpush1.msra.mxu0 0.0
    %126 = vmatprep.subr.mxu0 0.0
    %127 = vmatpush1.msra.mxu0 0.0
    %128 = vmatprep.subr.mxu0 0.0
    %129 = vmatpush1.msra.mxu0 0.0
    %130 = vmatprep.subr.mxu0 0.0
    %131 = vmatpush1.msra.mxu0 0.0
    %132 = vmatprep.subr.mxu0 0.0
    %133 = vmatpush1.msra.mxu0 0.0
    %134 = vmatprep.subr.mxu0 0.0
    %135 = vmatpush1.msra.mxu0 0.0
    %136 = vmatprep.subr.mxu0 0.0
    %137 = vmatpush1.msra.mxu0 0.0
    %138 = vmatprep.subr.mxu0 0.0
    %139 = vmatpush1.msra.mxu0 0.0
    %140 = vmatprep.subr.mxu0 0.0
    %141 = vmatpush1.msra.mxu0 0.0
    %142 = vmatprep.subr.mxu0 0.0
    %143 = vmatpush1.msra.mxu0 0.0
    %144 = vmatprep.subr.mxu0 0.0
    %145 = vmatpush1.msra.mxu0 0.0
    %146 = vmatprep.subr.mxu0 0.0
    %147 = vmatpush1.msra.mxu0 0.0
    %148 = vmatprep.subr.mxu0 0.0
    %149 = vmatpush1.msra.mxu0 0.0
    %150 = vmatprep.subr.mxu0 0.0
    %151 = vmatpush1.msra.mxu0 0.0
    %152 = vmatprep.subr.mxu0 0.0
    %153 = vmatpush1.msra.mxu0 0.0
    %154 = vmatprep.subr.mxu0 0.0
    %155 = vmatpush1.msra.mxu0 0.0
    %156 = vmatprep.subr.mxu0 0.0
    %157 = vmatpush1.msra.mxu0 0.0
    %158 = vmatprep.subr.mxu0 0.0
    %159 = vmatpush1.msra.mxu0 0.0
    %160 = vmatprep.subr.mxu0 0.0
    %161 = vmatpush1.msra.mxu0 0.0
    %162 = vmatprep.subr.mxu0 0.0
    %163 = vmatpush1.msra.mxu0 0.0
    %164 = vmatprep.mubr.f32.mxu0 0.0
    %165 = vmatmul.mubr.f32.gmra.mrb[0].mxu0 %v73
    %v166 = vpop.f32.mrb[0].mxu0
    %v167 = vadd.f32 %v69, %v166
    %v168 = vpop.f32.mrb[0].mxu0
    %169 = vmatprep.mubr.f32.mxu0 0.0
    %170 = vmatmul.mubr.f32.gmra.mrb[0].mxu0 %v76
    %v171 = vpop.f32.mrb[0].mxu0
    %v172 = vadd.f32 %v69, %v171
    %v173 = vpop.f32.mrb[0].mxu0
    %174 = vmatprep.mubr.f32.mxu0 0.0
    %175 = vmatmul.mubr.f32.gmra.mrb[0].mxu0 %v79
    %v176 = vpop.f32.mrb[0].mxu0
    %v177 = vadd.f32 %v69, %v176
    %v178 = vpop.f32.mrb[0].mxu0
    %179 = vmatprep.mubr.f32.mxu0 0.0
    %180 = vmatmul.mubr.f32.gmra.mrb[0].mxu0 %v82
    %v181 = vpop.f32.mrb[0].mxu0
    %v182 = vadd.f32 %v69, %v181
    %v183 = vpop.f32.mrb[0].mxu0
    %184 = vmatprep.mubr.f32.mxu0 0.0
    %185 = vmatmul.mubr.f32.gmra.mrb[0].mxu0 %v85
    %v186 = vpop.f32.mrb[0].mxu0
    %v187 = vadd.f32 %v69, %v186
    %v188 = vpop.f32.mrb[0].mxu0
    %189 = vmatprep.mubr.f32.mxu0 0.0
    %190 = vmatmul.mubr.f32.gmra.mrb[0].mxu0 %v88
    %v191 = vpop.f32.mrb[0].mxu0
    %v192 = vadd.f32 %v69, %v191
    %v193 = vpop.f32.mrb[0].mxu0
    %194 = vmatprep.mubr.f32.mxu0 0.0
    %195 = vmatmul.mubr.f32.gmra.mrb[0].mxu0 %v91
    %v196 = vpop.f32.mrb[0].mxu0
    %v197 = vadd.f32 %v69, %v196
    %v198 = vpop.f32.mrb[0].mxu0
    %199 = vmatprep.mubr.f32.mxu0 0.0
    %200 = vmatmul.mubr.f32.gmra.mrb[0].mxu0 %v94
    %v201 = vpop.f32.mrb[0].mxu0
    %v202 = vadd.f32 %v69, %v201
    %v203 = vpop.f32.mrb[0].mxu0
    %204 = vdwg.mxu0
    %vm205 = vcmask 785408
    %206 = vst.msk [vmem:[#allocation2] sm:$0xff] %vm205, 0.0
    %v207 = vadd.f32 %v167, 0.0
    %v208 = vmul.f32 %v207, %v52
    %v209 = vtanh.pop %v208
    %v210 = vmul.f32 %v209, %v52
    %v211 = vadd.f32 %v210, %v53
    %v212 = vmul.f32 %v211, 0.0
    %214 = vrot.lane.b32.xlu0 %v211, 64
    %v215 = vpop.permute.xlu0 %214
    %v217 = vmul.f32 %v211, %v215
    %219 = vrot.lane.b32.xlu0 %v217, 32
    %v220 = vpop.permute.xlu0 %219
    %v222 = vadd.f32 %v212, %v220
    %v223 = vtanh.pop %v222
    %225 = vrot.lane.b32.xlu0 %v223, 64
    %v226 = vpop.permute.xlu0 %225
    %v228 = vmul.f32 %v211, %v226
    %vm229 = vcmp.gt.f32.partialorder 0.0, %v43
    %v230 = vsub.f32 %v228, %v43
    %v231 = vsel %vm229, %v230, %v228
    %vm232 = vcmp.gt.f32.partialorder %v231, %v43
    %v233 = vsel %vm232, 1, 0
    %v234 = vcvt.s32.f32 %v233
    %236 = vrot.lane.b32.xlu0 %v231, 32
    %v237 = vpop.permute.xlu0 %236
    %vm239 = vcmask 261120
    %240 = vst.msk [vmem:[#allocation2] sm:$0xff] %vm239, %v237
    %242 = vrot.lane.b32.xlu0 %v234, 64
    %v243 = vpop.permute.xlu0 %242
    %vm245 = vcmask 523520
    %246 = vst.msk [vmem:[#allocation2] sm:$0xff] %vm245, %v243
    %v247 = vld [vmem:[#allocation2] sm:$0xff]
    %v248 = vld [vmem:[%s3] sm:$0xff]
    %v249 = vld [vmem:[%s3 + $0x8] sm:$0xff]
    %v250 = vld [vmem:[%s3 + $0x10] sm:$0xff]
    %v251 = vld [vmem:[%s3 + $0x18] sm:$0xff]
    %v252 = vld [vmem:[%s3 + $0x20] sm:$0xff]
    %v253 = vld [vmem:[%s3 + $0x28] sm:$0xff]
    %v254 = vld [vmem:[%s3 + $0x30] sm:$0xff]
    %v255 = vld [vmem:[%s3 + $0x38] sm:$0xff]
    %v256 = vld [vmem:[%s3 + $0x40] sm:$0xff]
    %v257 = vld [vmem:[%s3 + $0x48] sm:$0xff]
    %v258 = vld [vmem:[%s3 + $0x50] sm:$0xff]
    %v259 = vld [vmem:[%s3 + $0x58] sm:$0xff]
    %v260 = vld [vmem:[%s3 + $0x60] sm:$0xff]
    %v261 = vld [vmem:[%s3 + $0x68] sm:$0xff]
    %v262 = vld [vmem:[%s3 + $0x70] sm:$0xff]
    %v263 = vld [vmem:[%s3 + $0x78] sm:$0xff]
    %v264 = vld [vmem:[%s3 + $0x80] sm:$0xff]
    %v265 = vld [vmem:[%s3 + $0x88] sm:$0xff]
    %v266 = vld [vmem:[%s3 + $0x90] sm:$0xff]
    %v267 = vld [vmem:[%s3 + $0x98] sm:$0xff]
    %v268 = vld [vmem:[%s3 + $0xa0] sm:$0xff]
    %v269 = vld [vmem:[%s3 + $0xa8] sm:$0xff]
    %v270 = vld [vmem:[%s3 + $0xb0] sm:$0xff]
    %v271 = vld [vmem:[%s3 + $0xb8] sm:$0xff]
    %v273 = vsel %vm205, %v247, 0
    %275 = vmatprep.subr.mxu0 %v249
    %276 = vmatpush1.msra.mxu0 %v248
    %277 = vmatprep.subr.mxu0 %v251
    %278 = vmatpush1.msra.mxu0 %v250
    %279 = vmatprep.subr.mxu0 %v253
    %280 = vmatpush1.msra.mxu0 %v252
    %281 = vmatprep.subr.mxu0 %v255
    %282 = vmatpush1.msra.mxu0 %v254
    %283 = vmatprep.subr.mxu0 %v257
    %284 = vmatpush1.msra.mxu0 %v256
    %285 = vmatprep.subr.mxu0 %v259
    %286 = vmatpush1.msra.mxu0 %v258
    %287 = vmatprep.subr.mxu0 %v261
    %288 = vmatpush1.msra.mxu0 %v260
    %289 = vmatprep.subr.mxu0 %v263
    %290 = vmatpush1.msra.mxu0 %v262
    %291 = vmatprep.subr.mxu0 %v265
    %292 = vmatpush1.msra.mxu0 %v264
    %293 = vmatprep.subr.mxu0 %v267
    %294 = vmatpush1.msra.mxu0 %v266
    %295 = vmatprep.subr.mxu0 %v269
    %296 = vmatpush1.msra.mxu0 %v268
    %297 = vmatprep.subr.mxu0 %v271
    %298 = vmatpush1.msra.mxu0 %v270
    %299 = vmatprep.subr.mxu0 0.0
    %300 = vmatpush1.msra.mxu0 0.0
    %301 = vmatprep.subr.mxu0 0.0
    %302 = vmatpush1.msra.mxu0 0.0
    %303 = vmatprep.subr.mxu0 0.0
    %304 = vmatpush1.msra.mxu0 0.0
    %305 = vmatprep.subr.mxu0 0.0
    %306 = vmatpush1.msra.mxu0 0.0
    %307 = vmatprep.subr.mxu0 0.0
    %308 = vmatpush1.msra.mxu0 0.0
    %309 = vmatprep.subr.mxu0 0.0
    %310 = vmatpush1.msra.mxu0 0.0
    %311 = vmatprep.subr.mxu0 0.0
    %312 = vmatpush1.msra.mxu0 0.0
    %313 = vmatprep.subr.mxu0 0.0
    %314 = vmatpush1.msra.mxu0 0.0
    %315 = vmatprep.subr.mxu0 0.0
    %316 = vmatpush1.msra.mxu0 0.0
    %317 = vmatprep.subr.mxu0 0.0
    %318 = vmatpush1.msra.mxu0 0.0
    %319 = vmatprep.subr.mxu0 0.0
    %320 = vmatpush1.msra.mxu0 0.0
    %321 = vmatprep.subr.mxu0 0.0
    %322 = vmatpush1.msra.mxu0 0.0
    %323 = vmatprep.subr.mxu0 0.0
    %324 = vmatpush1.msra.mxu0 0.0
    %325 = vmatprep.subr.mxu0 0.0
    %326 = vmatpush1.msra.mxu0 0.0
    %327 = vmatprep.subr.mxu0 0.0
    %328 = vmatpush1.msra.mxu0 0.0
    %329 = vmatprep.subr.mxu0 0.0
    %330 = vmatpush1.msra.mxu0 0.0
    %331 = vmatprep.subr.mxu0 0.0
    %332 = vmatpush1.msra.mxu0 0.0
    %333 = vmatprep.subr.mxu0 0.0
    %334 = vmatpush1.msra.mxu0 0.0
    %335 = vmatprep.subr.mxu0 0.0
    %336 = vmatpush1.msra.mxu0 0.0
    %337 = vmatprep.subr.mxu0 0.0
    %338 = vmatpush1.msra.mxu0 0.0
    %339 = vmatprep.mubr.f32.mxu0 0.0
    %340 = vmatmul.mubr.f32.gmra.mrb[0].mxu0 %v273
    %v341 = vpop.f32.mrb[0].mxu0
    %v342 = vadd.f32 0.0, %v341
    %v343 = vpop.f32.mrb[0].mxu0
    %v344 = vadd.f32 0.0, %v343
    %345 = vdwg.mxu0
    %v347 = vlaneseq
    %v348 = vshrl.u32 %v347, 7
    %v349 = vsub.s32 0, %v348
    %v350 = vrot.slane %v46, %v349
    %v352 = vadd.f32 %v344, %v350
    %v353 = vmul.f32 %v352, %v52
    %v354 = vtanh.pop %v353
    %v355 = vmul.f32 %v354, %v52
    %v356 = vadd.f32 %v355, %v53
    %v357 = vmul.f32 %v356, 0.0
    %359 = vrot.lane.b32.xlu0 %v356, 64
    %v360 = vpop.permute.xlu0 %359
    %v362 = vmul.f32 %v356, %v360
    %364 = vrot.lane.b32.xlu0 %v362, 32
    %v365 = vpop.permute.xlu0 %364
    %v367 = vadd.f32 %v357, %v365
    %v368 = vtanh.pop %v367
    %370 = vrot.lane.b32.xlu0 %v368, 64
    %v371 = vpop.permute.xlu0 %370
    %v373 = vmul.f32 %v356, %v371
    %vm374 = vcmp.gt.f32.partialorder 0.0, %v45
    %v375 = vsub.f32 %v373, %v45
    %v376 = vsel %vm374, %v375, %v373
    %378 = vrot.lane.b32.xlu0 %v376, 96
    %v379 = vpop.permute.xlu0 %378
    %vm381 = vcmask 785920
    %382 = vst.msk [vmem:[#allocation2] sm:$0xff] %vm381, %v379
    %v383 = vmul.f32 %v376, 0.1042467
    %v384 = vadd.f32 %v383, 0.0
    %v385 = vadd.f32 %v172, %v342
    %v386 = vmul.f32 %v385, %v52
    %v387 = vtanh.pop %v386
    %v388 = vmul.f32 %v387, %v52
    %v389 = vadd.f32 %v388, %v53
    %v390 = vmul.f32 %v389, %v222
    %392 = vrot.lane.b32.xlu0 %v389, 64
    %v393 = vpop.permute.xlu0 %392
    %v395 = vmul.f32 %v389, %v393
    %397 = vrot.lane.b32.xlu0 %v395, 32
    %v398 = vpop.permute.xlu0 %397
    %v400 = vadd.f32 %v390, %v398
    %v401 = vtanh.pop %v400
    %403 = vrot.lane.b32.xlu0 %v401, 64
    %v404 = vpop.permute.xlu0 %403
    %v406 = vmul.f32 %v389, %v404
    %v407 = vsub.f32 %v406, %v43
    %v408 = vsel %vm232, %v407, %v406
    %vm409 = vcmp.gt.f32.partialorder %v408, %v43
    %v410 = vsel %vm409, 1, 0
    %v411 = vcvt.s32.f32 %v410
    %413 = vrot.lane.b32.xlu0 %v408, 32
    %v414 = vpop.permute.xlu0 %413
    %416 = vst.msk [vmem:[#allocation2] sm:$0xff] %vm239, %v414
    %418 = vrot.lane.b32.xlu0 %v411, 64
    %v419 = vpop.permute.xlu0 %418
    %421 = vst.msk [vmem:[#allocation2] sm:$0xff] %vm245, %v419
    %v422 = vld [vmem:[#allocation2] sm:$0xff]
    %v423 = vld [vmem:[%s3] sm:$0xff]
    %v424 = vld [vmem:[%s3 + $0x8] sm:$0xff]
    %v425 = vld [vmem:[%s3 + $0x10] sm:$0xff]
    %v426 = vld [vmem:[%s3 + $0x18] sm:$0xff]
    %v427 = vld [vmem:[%s3 + $0x20] sm:$0xff]
    %v428 = vld [vmem:[%s3 + $0x28] sm:$0xff]
    %v429 = vld [vmem:[%s3 + $0x30] sm:$0xff]
    %v430 = vld [vmem:[%s3 + $0x38] sm:$0xff]
    %v431 = vld [vmem:[%s3 + $0x40] sm:$0xff]
    %v432 = vld [vmem:[%s3 + $0x48] sm:$0xff]
    %v433 = vld [vmem:[%s3 + $0x50] sm:$0xff]
    %v434 = vld [vmem:[%s3 + $0x58] sm:$0xff]
    %v435 = vld [vmem:[%s3 + $0x60] sm:$0xff]
    %v436 = vld [vmem:[%s3 + $0x68] sm:$0xff]
    %v437 = vld [vmem:[%s3 + $0x70] sm:$0xff]
    %v438 = vld [vmem:[%s3 + $0x78] sm:$0xff]
    %v439 = vld [vmem:[%s3 + $0x80] sm:$0xff]
    %v440 = vld [vmem:[%s3 + $0x88] sm:$0xff]
    %v441 = vld [vmem:[%s3 + $0x90] sm:$0xff]
    %v442 = vld [vmem:[%s3 + $0x98] sm:$0xff]
    %v443 = vld [vmem:[%s3 + $0xa0] sm:$0xff]
    %v444 = vld [vmem:[%s3 + $0xa8] sm:$0xff]
    %v445 = vld [vmem:[%s3 + $0xb0] sm:$0xff]
    %v446 = vld [vmem:[%s3 + $0xb8] sm:$0xff]
    %v448 = vsel %vm205, %v422, 0
    %450 = vmatprep.subr.mxu0 %v424
    %451 = vmatpush1.msra.mxu0 %v423
    %452 = vmatprep.subr.mxu0 %v426
    %453 = vmatpush1.msra.mxu0 %v425
    %454 = vmatprep.subr.mxu0 %v428
    %455 = vmatpush1.msra.mxu0 %v427
    %456 = vmatprep.subr.mxu0 %v430
    %457 = vmatpush1.msra.mxu0 %v429
    %458 = vmatprep.subr.mxu0 %v432
    %459 = vmatpush1.msra.mxu0 %v431
    %460 = vmatprep.subr.mxu0 %v434
    %461 = vmatpush1.msra.mxu0 %v433
    %462 = vmatprep.subr.mxu0 %v436
    %463 = vmatpush1.msra.mxu0 %v435
    %464 = vmatprep.subr.mxu0 %v438
    %465 = vmatpush1.msra.mxu0 %v437
    %466 = vmatprep.subr.mxu0 %v440
    %467 = vmatpush1.msra.mxu0 %v439
    %468 = vmatprep.subr.mxu0 %v442
    %469 = vmatpush1.msra.mxu0 %v441
    %470 = vmatprep.subr.mxu0 %v444
    %471 = vmatpush1.msra.mxu0 %v443
    %472 = vmatprep.subr.mxu0 %v446
    %473 = vmatpush1.msra.mxu0 %v445
    %474 = vmatprep.subr.mxu0 0.0
    %475 = vmatpush1.msra.mxu0 0.0
    %476 = vmatprep.subr.mxu0 0.0
    %477 = vmatpush1.msra.mxu0 0.0
    %478 = vmatprep.subr.mxu0 0.0
    %479 = vmatpush1.msra.mxu0 0.0
    %480 = vmatprep.subr.mxu0 0.0
    %481 = vmatpush1.msra.mxu0 0.0
    %482 = vmatprep.subr.mxu0 0.0
    %483 = vmatpush1.msra.mxu0 0.0
    %484 = vmatprep.subr.mxu0 0.0
    %485 = vmatpush1.msra.mxu0 0.0
    %486 = vmatprep.subr.mxu0 0.0
    %487 = vmatpush1.msra.mxu0 0.0
    %488 = vmatprep.subr.mxu0 0.0
    %489 = vmatpush1.msra.mxu0 0.0
    %490 = vmatprep.subr.mxu0 0.0
    %491 = vmatpush1.msra.mxu0 0.0
    %492 = vmatprep.subr.mxu0 0.0
    %493 = vmatpush1.msra.mxu0 0.0
    %494 = vmatprep.subr.mxu0 0.0
    %495 = vmatpush1.msra.mxu0 0.0
    %496 = vmatprep.subr.mxu0 0.0
    %497 = vmatpush1.msra.mxu0 0.0
    %498 = vmatprep.subr.mxu0 0.0
    %499 = vmatpush1.msra.mxu0 0.0
    %500 = vmatprep.subr.mxu0 0.0
    %501 = vmatpush1.msra.mxu0 0.0
    %502 = vmatprep.subr.mxu0 0.0
    %503 = vmatpush1.msra.mxu0 0.0
    %504 = vmatprep.subr.mxu0 0.0
    %505 = vmatpush1.msra.mxu0 0.0
    %506 = vmatprep.subr.mxu0 0.0
    %507 = vmatpush1.msra.mxu0 0.0
    %508 = vmatprep.subr.mxu0 0.0
    %509 = vmatpush1.msra.mxu0 0.0
    %510 = vmatprep.subr.mxu0 0.0
    %511 = vmatpush1.msra.mxu0 0.0
    %512 = vmatprep.subr.mxu0 0.0
    %513 = vmatpush1.msra.mxu0 0.0
    %514 = vmatprep.mubr.f32.mxu0 0.0
    %515 = vmatmul.mubr.f32.gmra.mrb[0].mxu0 %v448
    %v516 = vpop.f32.mrb[0].mxu0
    %v517 = vadd.f32 0.0, %v516
    %v518 = vpop.f32.mrb[0].mxu0
    %v519 = vadd.f32 0.0, %v518
    %520 = vdwg.mxu0
    %v521 = vadd.f32 %v519, %v350
    %v522 = vmul.f32 %v521, %v52
    %v523 = vtanh.pop %v522
    %v524 = vmul.f32 %v523, %v52
    %v525 = vadd.f32 %v524, %v53
    %v526 = vmul.f32 %v525, %v367
    %528 = vrot.lane.b32.xlu0 %v525, 64
    %v529 = vpop.permute.xlu0 %528
    %v531 = vmul.f32 %v525, %v529
    %533 = vrot.lane.b32.xlu0 %v531, 32
    %v534 = vpop.permute.xlu0 %533
    %v536 = vadd.f32 %v526, %v534
    %v537 = vtanh.pop %v536
    %539 = vrot.lane.b32.xlu0 %v537, 64
    %v540 = vpop.permute.xlu0 %539
    %v542 = vmul.f32 %v525, %v540
    %vm543 = vcmp.gt.f32.partialorder %v376, %v45
    %v544 = vsub.f32 %v542, %v45
    %v545 = vsel %vm543, %v544, %v542
    %547 = vrot.lane.b32.xlu0 %v545, 96
    %v548 = vpop.permute.xlu0 %547
    %550 = vst.msk [vmem:[#allocation2] sm:$0xff] %vm381, %v548
    %v551 = vmul.f32 %v545, 0.109591536
    %v552 = vadd.f32 %v384, %v551
    %v553 = vadd.f32 %v177, %v517
    %v554 = vmul.f32 %v553, %v52
    %v555 = vtanh.pop %v554
    %v556 = vmul.f32 %v555, %v52
    %v557 = vadd.f32 %v556, %v53
    %v558 = vmul.f32 %v557, %v400
    %560 = vrot.lane.b32.xlu0 %v557, 64
    %v561 = vpop.permute.xlu0 %560
    %v563 = vmul.f32 %v557, %v561
    %565 = vrot.lane.b32.xlu0 %v563, 32
    %v566 = vpop.permute.xlu0 %565
    %v568 = vadd.f32 %v558, %v566
    %v569 = vtanh.pop %v568
    %571 = vrot.lane.b32.xlu0 %v569, 64
    %v572 = vpop.permute.xlu0 %571
    %v574 = vmul.f32 %v557, %v572
    %v575 = vsub.f32 %v574, %v43
    %v576 = vsel %vm409, %v575, %v574
    %vm577 = vcmp.gt.f32.partialorder %v576, %v43
    %v578 = vsel %vm577, 1, 0
    %v579 = vcvt.s32.f32 %v578
    %581 = vrot.lane.b32.xlu0 %v576, 32
    %v582 = vpop.permute.xlu0 %581
    %584 = vst.msk [vmem:[#allocation2] sm:$0xff] %vm239, %v582
    %586 = vrot.lane.b32.xlu0 %v579, 64
    %v587 = vpop.permute.xlu0 %586
    %589 = vst.msk [vmem:[#allocation2] sm:$0xff] %vm245, %v587
    %v590 = vld [vmem:[#allocation2] sm:$0xff]
    %v591 = vld [vmem:[%s3] sm:$0xff]
    %v592 = vld [vmem:[%s3 + $0x8] sm:$0xff]
    %v593 = vld [vmem:[%s3 + $0x10] sm:$0xff]
    %v594 = vld [vmem:[%s3 + $0x18] sm:$0xff]
    %v595 = vld [vmem:[%s3 + $0x20] sm:$0xff]
    %v596 = vld [vmem:[%s3 + $0x28] sm:$0xff]
    %v597 = vld [vmem:[%s3 + $0x30] sm:$0xff]
    %v598 = vld [vmem:[%s3 + $0x38] sm:$0xff]
    %v599 = vld [vmem:[%s3 + $0x40] sm:$0xff]
    %v600 = vld [vmem:[%s3 + $0x48] sm:$0xff]
    %v601 = vld [vmem:[%s3 + $0x50] sm:$0xff]
    %v602 = vld [vmem:[%s3 + $0x58] sm:$0xff]
    %v603 = vld [vmem:[%s3 + $0x60] sm:$0xff]
    %v604 = vld [vmem:[%s3 + $0x68] sm:$0xff]
    %v605 = vld [vmem:[%s3 + $0x70] sm:$0xff]
    %v606 = vld [vmem:[%s3 + $0x78] sm:$0xff]
    %v607 = vld [vmem:[%s3 + $0x80] sm:$0xff]
    %v608 = vld [vmem:[%s3 + $0x88] sm:$0xff]
    %v609 = vld [vmem:[%s3 + $0x90] sm:$0xff]
    %v610 = vld [vmem:[%s3 + $0x98] sm:$0xff]
    %v611 = vld [vmem:[%s3 + $0xa0] sm:$0xff]
    %v612 = vld [vmem:[%s3 + $0xa8] sm:$0xff]
    %v613 = vld [vmem:[%s3 + $0xb0] sm:$0xff]
    %v614 = vld [vmem:[%s3 + $0xb8] sm:$0xff]
    %v616 = vsel %vm205, %v590, 0
    %618 = vmatprep.subr.mxu0 %v592
    %619 = vmatpush1.msra.mxu0 %v591
    %620 = vmatprep.subr.mxu0 %v594
    %621 = vmatpush1.msra.mxu0 %v593
    %622 = vmatprep.subr.mxu0 %v596
    %623 = vmatpush1.msra.mxu0 %v595
    %624 = vmatprep.subr.mxu0 %v598
    %625 = vmatpush1.msra.mxu0 %v597
    %626 = vmatprep.subr.mxu0 %v600
    %627 = vmatpush1.msra.mxu0 %v599
    %628 = vmatprep.subr.mxu0 %v602
    %629 = vmatpush1.msra.mxu0 %v601
    %630 = vmatprep.subr.mxu0 %v604
    %631 = vmatpush1.msra.mxu0 %v603
    %632 = vmatprep.subr.mxu0 %v606
    %633 = vmatpush1.msra.mxu0 %v605
    %634 = vmatprep.subr.mxu0 %v608
    %635 = vmatpush1.msra.mxu0 %v607
    %636 = vmatprep.subr.mxu0 %v610
    %637 = vmatpush1.msra.mxu0 %v609
    %638 = vmatprep.subr.mxu0 %v612
    %639 = vmatpush1.msra.mxu0 %v611
    %640 = vmatprep.subr.mxu0 %v614
    %641 = vmatpush1.msra.mxu0 %v613
    %642 = vmatprep.subr.mxu0 0.0
    %643 = vmatpush1.msra.mxu0 0.0
    %644 = vmatprep.subr.mxu0 0.0
    %645 = vmatpush1.msra.mxu0 0.0
    %646 = vmatprep.subr.mxu0 0.0
    %647 = vmatpush1.msra.mxu0 0.0
    %648 = vmatprep.subr.mxu0 0.0
    %649 = vmatpush1.msra.mxu0 0.0
    %650 = vmatprep.subr.mxu0 0.0
    %651 = vmatpush1.msra.mxu0 0.0
    %652 = vmatprep.subr.mxu0 0.0
    %653 = vmatpush1.msra.mxu0 0.0
    %654 = vmatprep.subr.mxu0 0.0
    %655 = vmatpush1.msra.mxu0 0.0
    %656 = vmatprep.subr.mxu0 0.0
    %657 = vmatpush1.msra.mxu0 0.0
    %658 = vmatprep.subr.mxu0 0.0
    %659 = vmatpush1.msra.mxu0 0.0
    %660 = vmatprep.subr.mxu0 0.0
    %661 = vmatpush1.msra.mxu0 0.0
    %662 = vmatprep.subr.mxu0 0.0
    %663 = vmatpush1.msra.mxu0 0.0
    %664 = vmatprep.subr.mxu0 0.0
    %665 = vmatpush1.msra.mxu0 0.0
    %666 = vmatprep.subr.mxu0 0.0
    %667 = vmatpush1.msra.mxu0 0.0
    %668 = vmatprep.subr.mxu0 0.0
    %669 = vmatpush1.msra.mxu0 0.0
    %670 = vmatprep.subr.mxu0 0.0
    %671 = vmatpush1.msra.mxu0 0.0
    %672 = vmatprep.subr.mxu0 0.0
    %673 = vmatpush1.msra.mxu0 0.0
    %674 = vmatprep.subr.mxu0 0.0
    %675 = vmatpush1.msra.mxu0 0.0
    %676 = vmatprep.subr.mxu0 0.0
    %677 = vmatpush1.msra.mxu0 0.0
    %678 = vmatprep.subr.mxu0 0.0
    %679 = vmatpush1.msra.mxu0 0.0
    %680 = vmatprep.subr.mxu0 0.0
    %681 = vmatpush1.msra.mxu0 0.0
    %682 = vmatprep.mubr.f32.mxu0 0.0
    %683 = vmatmul.mubr.f32.gmra.mrb[0].mxu0 %v616
    %v684 = vpop.f32.mrb[0].mxu0
    %v685 = vadd.f32 0.0, %v684
    %v686 = vpop.f32.mrb[0].mxu0
    %v687 = vadd.f32 0.0, %v686
    %688 = vdwg.mxu0
    %v689 = vadd.f32 %v687, %v350
    %v690 = vmul.f32 %v689, %v52
    %v691 = vtanh.pop %v690
    %v692 = vmul.f32 %v691, %v52
    %v693 = vadd.f32 %v692, %v53
    %v694 = vmul.f32 %v693, %v536
    %696 = vrot.lane.b32.xlu0 %v693, 64
    %v697 = vpop.permute.xlu0 %696
    %v699 = vmul.f32 %v693, %v697
    %701 = vrot.lane.b32.xlu0 %v699, 32
    %v702 = vpop.permute.xlu0 %701
    %v704 = vadd.f32 %v694, %v702
    %v705 = vtanh.pop %v704
    %707 = vrot.lane.b32.xlu0 %v705, 64
    %v708 = vpop.permute.xlu0 %707
    %v710 = vmul.f32 %v693, %v708
    %vm711 = vcmp.gt.f32.partialorder %v545, %v45
    %v712 = vsub.f32 %v710, %v45
    %v713 = vsel %vm711, %v712, %v710
    %715 = vrot.lane.b32.xlu0 %v713, 96
    %v716 = vpop.permute.xlu0 %715
    %718 = vst.msk [vmem:[#allocation2] sm:$0xff] %vm381, %v716
    %v719 = vmul.f32 %v713, 0.11521041
    %v720 = vadd.f32 %v552, %v719
    %v721 = vadd.f32 %v182, %v685
    %v722 = vmul.f32 %v721, %v52
    %v723 = vtanh.pop %v722
    %v724 = vmul.f32 %v723, %v52
    %v725 = vadd.f32 %v724, %v53
    %v726 = vmul.f32 %v725, %v568
    %728 = vrot.lane.b32.xlu0 %v725, 64
    %v729 = vpop.permute.xlu0 %728
    %v731 = vmul.f32 %v725, %v729
    %733 = vrot.lane.b32.xlu0 %v731, 32
    %v734 = vpop.permute.xlu0 %733
    %v736 = vadd.f32 %v726, %v734
    %v737 = vtanh.pop %v736
    %739 = vrot.lane.b32.xlu0 %v737, 64
    %v740 = vpop.permute.xlu0 %739
    %v742 = vmul.f32 %v725, %v740
    %v743 = vsub.f32 %v742, %v43
    %v744 = vsel %vm577, %v743, %v742
    %vm745 = vcmp.gt.f32.partialorder %v744, %v43
    %v746 = vsel %vm745, 1, 0
    %v747 = vcvt.s32.f32 %v746
    %749 = vrot.lane.b32.xlu0 %v744, 32
    %v750 = vpop.permute.xlu0 %749
    %752 = vst.msk [vmem:[#allocation2] sm:$0xff] %vm239, %v750
    %754 = vrot.lane.b32.xlu0 %v747, 64
    %v755 = vpop.permute.xlu0 %754
    %757 = vst.msk [vmem:[#allocation2] sm:$0xff] %vm245, %v755
    %v758 = vld [vmem:[#allocation2] sm:$0xff]
    %v759 = vld [vmem:[%s3] sm:$0xff]
    %v760 = vld [vmem:[%s3 + $0x8] sm:$0xff]
    %v761 = vld [vmem:[%s3 + $0x10] sm:$0xff]
    %v762 = vld [vmem:[%s3 + $0x18] sm:$0xff]
    %v763 = vld [vmem:[%s3 + $0x20] sm:$0xff]
    %v764 = vld [vmem:[%s3 + $0x28] sm:$0xff]
    %v765 = vld [vmem:[%s3 + $0x30] sm:$0xff]
    %v766 = vld [vmem:[%s3 + $0x38] sm:$0xff]
    %v767 = vld [vmem:[%s3 + $0x40] sm:$0xff]
    %v768 = vld [vmem:[%s3 + $0x48] sm:$0xff]
    %v769 = vld [vmem:[%s3 + $0x50] sm:$0xff]
    %v770 = vld [vmem:[%s3 + $0x58] sm:$0xff]
    %v771 = vld [vmem:[%s3 + $0x60] sm:$0xff]
    %v772 = vld [vmem:[%s3 + $0x68] sm:$0xff]
    %v773 = vld [vmem:[%s3 + $0x70] sm:$0xff]
    %v774 = vld [vmem:[%s3 + $0x78] sm:$0xff]
    %v775 = vld [vmem:[%s3 + $0x80] sm:$0xff]
    %v776 = vld [vmem:[%s3 + $0x88] sm:$0xff]
    %v777 = vld [vmem:[%s3 + $0x90] sm:$0xff]
    %v778 = vld [vmem:[%s3 + $0x98] sm:$0xff]
    %v779 = vld [vmem:[%s3 + $0xa0] sm:$0xff]
    %v780 = vld [vmem:[%s3 + $0xa8] sm:$0xff]
    %v781 = vld [vmem:[%s3 + $0xb0] sm:$0xff]
    %v782 = vld [vmem:[%s3 + $0xb8] sm:$0xff]
    %v784 = vsel %vm205, %v758, 0
    %786 = vmatprep.subr.mxu0 %v760
    %787 = vmatpush1.msra.mxu0 %v759
    %788 = vmatprep.subr.mxu0 %v762
    %789 = vmatpush1.msra.mxu0 %v761
    %790 = vmatprep.subr.mxu0 %v764
    %791 = vmatpush1.msra.mxu0 %v763
    %792 = vmatprep.subr.mxu0 %v766
    %793 = vmatpush1.msra.mxu0 %v765
    %794 = vmatprep.subr.mxu0 %v768
    %795 = vmatpush1.msra.mxu0 %v767
    %796 = vmatprep.subr.mxu0 %v770
    %797 = vmatpush1.msra.mxu0 %v769
    %798 = vmatprep.subr.mxu0 %v772
    %799 = vmatpush1.msra.mxu0 %v771
    %800 = vmatprep.subr.mxu0 %v774
    %801 = vmatpush1.msra.mxu0 %v773
    %802 = vmatprep.subr.mxu0 %v776
    %803 = vmatpush1.msra.mxu0 %v775
    %804 = vmatprep.subr.mxu0 %v778
    %805 = vmatpush1.msra.mxu0 %v777
    %806 = vmatprep.subr.mxu0 %v780
    %807 = vmatpush1.msra.mxu0 %v779
    %808 = vmatprep.subr.mxu0 %v782
    %809 = vmatpush1.msra.mxu0 %v781
    %810 = vmatprep.subr.mxu0 0.0
    %811 = vmatpush1.msra.mxu0 0.0
    %812 = vmatprep.subr.mxu0 0.0
    %813 = vmatpush1.msra.mxu0 0.0
    %814 = vmatprep.subr.mxu0 0.0
    %815 = vmatpush1.msra.mxu0 0.0
    %816 = vmatprep.subr.mxu0 0.0
    %817 = vmatpush1.msra.mxu0 0.0
    %818 = vmatprep.subr.mxu0 0.0
    %819 = vmatpush1.msra.mxu0 0.0
    %820 = vmatprep.subr.mxu0 0.0
    %821 = vmatpush1.msra.mxu0 0.0
    %822 = vmatprep.subr.mxu0 0.0
    %823 = vmatpush1.msra.mxu0 0.0
    %824 = vmatprep.subr.mxu0 0.0
    %825 = vmatpush1.msra.mxu0 0.0
    %826 = vmatprep.subr.mxu0 0.0
    %827 = vmatpush1.msra.mxu0 0.0
    %828 = vmatprep.subr.mxu0 0.0
    %829 = vmatpush1.msra.mxu0 0.0
    %830 = vmatprep.subr.mxu0 0.0
    %831 = vmatpush1.msra.mxu0 0.0
    %832 = vmatprep.subr.mxu0 0.0
    %833 = vmatpush1.msra.mxu0 0.0
    %834 = vmatprep.subr.mxu0 0.0
    %835 = vmatpush1.msra.mxu0 0.0
    %836 = vmatprep.subr.mxu0 0.0
    %837 = vmatpush1.msra.mxu0 0.0
    %838 = vmatprep.subr.mxu0 0.0
    %839 = vmatpush1.msra.mxu0 0.0
    %840 = vmatprep.subr.mxu0 0.0
    %841 = vmatpush1.msra.mxu0 0.0
    %842 = vmatprep.subr.mxu0 0.0
    %843 = vmatpush1.msra.mxu0 0.0
    %844 = vmatprep.subr.mxu0 0.0
    %845 = vmatpush1.msra.mxu0 0.0
    %846 = vmatprep.subr.mxu0 0.0
    %847 = vmatpush1.msra.mxu0 0.0
    %848 = vmatprep.subr.mxu0 0.0
    %849 = vmatpush1.msra.mxu0 0.0
    %850 = vmatprep.mubr.f32.mxu0 0.0
    %851 = vmatmul.mubr.f32.gmra.mrb[0].mxu0 %v784
    %v852 = vpop.f32.mrb[0].mxu0
    %v853 = vadd.f32 0.0, %v852
    %v854 = vpop.f32.mrb[0].mxu0
    %v855 = vadd.f32 0.0, %v854
    %856 = vdwg.mxu0
    %v857 = vadd.f32 %v855, %v350
    %v858 = vmul.f32 %v857, %v52
    %v859 = vtanh.pop %v858
    %v860 = vmul.f32 %v859, %v52
    %v861 = vadd.f32 %v860, %v53
    %v862 = vmul.f32 %v861, %v704
    %864 = vrot.lane.b32.xlu0 %v861, 64
    %v865 = vpop.permute.xlu0 %864
    %v867 = vmul.f32 %v861, %v865
    %869 = vrot.lane.b32.xlu0 %v867, 32
    %v870 = vpop.permute.xlu0 %869
    %v872 = vadd.f32 %v862, %v870
    %v873 = vtanh.pop %v872
    %875 = vrot.lane.b32.xlu0 %v873, 64
    %v876 = vpop.permute.xlu0 %875
    %v878 = vmul.f32 %v861, %v876
    %vm879 = vcmp.gt.f32.partialorder %v713, %v45
    %v880 = vsub.f32 %v878, %v45
    %v881 = vsel %vm879, %v880, %v878
    %883 = vrot.lane.b32.xlu0 %v881, 96
    %v884 = vpop.permute.xlu0 %883
    %886 = vst.msk [vmem:[#allocation2] sm:$0xff] %vm381, %v884
    %v887 = vmul.f32 %v881, 0.121117376
    %v888 = vadd.f32 %v720, %v887
    %v889 = vadd.f32 %v187, %v853
    %v890 = vmul.f32 %v889, %v52
    %v891 = vtanh.pop %v890
    %v892 = vmul.f32 %v891, %v52
    %v893 = vadd.f32 %v892, %v53
    %v894 = vmul.f32 %v893, %v736
    %896 = vrot.lane.b32.xlu0 %v893, 64
    %v897 = vpop.permute.xlu0 %896
    %v899 = vmul.f32 %v893, %v897
    %901 = vrot.lane.b32.xlu0 %v899, 32
    %v902 = vpop.permute.xlu0 %901
    %v904 = vadd.f32 %v894, %v902
    %v905 = vtanh.pop %v904
    %907 = vrot.lane.b32.xlu0 %v905, 64
    %v908 = vpop.permute.xlu0 %907
    %v910 = vmul.f32 %v893, %v908
    %v911 = vsub.f32 %v910, %v43
    %v912 = vsel %vm745, %v911, %v910
    %vm913 = vcmp.gt.f32.partialorder %v912, %v43
    %v914 = vsel %vm913, 1, 0
    %v915 = vcvt.s32.f32 %v914
    %917 = vrot.lane.b32.xlu0 %v912, 32
    %v918 = vpop.permute.xlu0 %917
    %920 = vst.msk [vmem:[#allocation2] sm:$0xff] %vm239, %v918
    %922 = vrot.lane.b32.xlu0 %v915, 64
    %v923 = vpop.permute.xlu0 %922
    %925 = vst.msk [vmem:[#allocation2] sm:$0xff] %vm245, %v923
    %v926 = vld [vmem:[#allocation2] sm:$0xff]
    %v927 = vld [vmem:[%s3] sm:$0xff]
    %v928 = vld [vmem:[%s3 + $0x8] sm:$0xff]
    %v929 = vld [vmem:[%s3 + $0x10] sm:$0xff]
    %v930 = vld [vmem:[%s3 + $0x18] sm:$0xff]
    %v931 = vld [vmem:[%s3 + $0x20] sm:$0xff]
    %v932 = vld [vmem:[%s3 + $0x28] sm:$0xff]
    %v933 = vld [vmem:[%s3 + $0x30] sm:$0xff]
    %v934 = vld [vmem:[%s3 + $0x38] sm:$0xff]
    %v935 = vld [vmem:[%s3 + $0x40] sm:$0xff]
    %v936 = vld [vmem:[%s3 + $0x48] sm:$0xff]
    %v937 = vld [vmem:[%s3 + $0x50] sm:$0xff]
    %v938 = vld [vmem:[%s3 + $0x58] sm:$0xff]
    %v939 = vld [vmem:[%s3 + $0x60] sm:$0xff]
    %v940 = vld [vmem:[%s3 + $0x68] sm:$0xff]
    %v941 = vld [vmem:[%s3 + $0x70] sm:$0xff]
    %v942 = vld [vmem:[%s3 + $0x78] sm:$0xff]
    %v943 = vld [vmem:[%s3 + $0x80] sm:$0xff]
    %v944 = vld [vmem:[%s3 + $0x88] sm:$0xff]
    %v945 = vld [vmem:[%s3 + $0x90] sm:$0xff]
    %v946 = vld [vmem:[%s3 + $0x98] sm:$0xff]
    %v947 = vld [vmem:[%s3 + $0xa0] sm:$0xff]
    %v948 = vld [vmem:[%s3 + $0xa8] sm:$0xff]
    %v949 = vld [vmem:[%s3 + $0xb0] sm:$0xff]
    %v950 = vld [vmem:[%s3 + $0xb8] sm:$0xff]
    %v952 = vsel %vm205, %v926, 0
    %954 = vmatprep.subr.mxu0 %v928
    %955 = vmatpush1.msra.mxu0 %v927
    %956 = vmatprep.subr.mxu0 %v930
    %957 = vmatpush1.msra.mxu0 %v929
    %958 = vmatprep.subr.mxu0 %v932
    %959 = vmatpush1.msra.mxu0 %v931
    %960 = vmatprep.subr.mxu0 %v934
    %961 = vmatpush1.msra.mxu0 %v933
    %962 = vmatprep.subr.mxu0 %v936
    %963 = vmatpush1.msra.mxu0 %v935
    %964 = vmatprep.subr.mxu0 %v938
    %965 = vmatpush1.msra.mxu0 %v937
    %966 = vmatprep.subr.mxu0 %v940
    %967 = vmatpush1.msra.mxu0 %v939
    %968 = vmatprep.subr.mxu0 %v942
    %969 = vmatpush1.msra.mxu0 %v941
    %970 = vmatprep.subr.mxu0 %v944
    %971 = vmatpush1.msra.mxu0 %v943
    %972 = vmatprep.subr.mxu0 %v946
    %973 = vmatpush1.msra.mxu0 %v945
    %974 = vmatprep.subr.mxu0 %v948
    %975 = vmatpush1.msra.mxu0 %v947
    %976 = vmatprep.subr.mxu0 %v950
    %977 = vmatpush1.msra.mxu0 %v949
    %978 = vmatprep.subr.mxu0 0.0
    %979 = vmatpush1.msra.mxu0 0.0
    %980 = vmatprep.subr.mxu0 0.0
    %981 = vmatpush1.msra.mxu0 0.0
    %982 = vmatprep.subr.mxu0 0.0
    %983 = vmatpush1.msra.mxu0 0.0
    %984 = vmatprep.subr.mxu0 0.0
    %985 = vmatpush1.msra.mxu0 0.0
    %986 = vmatprep.subr.mxu0 0.0
    %987 = vmatpush1.msra.mxu0 0.0
    %988 = vmatprep.subr.mxu0 0.0
    %989 = vmatpush1.msra.mxu0 0.0
    %990 = vmatprep.subr.mxu0 0.0
    %991 = vmatpush1.msra.mxu0 0.0
    %992 = vmatprep.subr.mxu0 0.0
    %993 = vmatpush1.msra.mxu0 0.0
    %994 = vmatprep.subr.mxu0 0.0
    %995 = vmatpush1.msra.mxu0 0.0
    %996 = vmatprep.subr.mxu0 0.0
    %997 = vmatpush1.msra.mxu0 0.0
    %998 = vmatprep.subr.mxu0 0.0
    %999 = vmatpush1.msra.mxu0 0.0
    %1000 = vmatprep.subr.mxu0 0.0
    %1001 = vmatpush1.msra.mxu0 0.0
    %1002 = vmatprep.subr.mxu0 0.0
    %1003 = vmatpush1.msra.mxu0 0.0
    %1004 = vmatprep.subr.mxu0 0.0
    %1005 = vmatpush1.msra.mxu0 0.0
    %1006 = vmatprep.subr.mxu0 0.0
    %1007 = vmatpush1.msra.mxu0 0.0
    %1008 = vmatprep.subr.mxu0 0.0
    %1009 = vmatpush1.msra.mxu0 0.0
    %1010 = vmatprep.subr.mxu0 0.0
    %1011 = vmatpush1.msra.mxu0 0.0
    %1012 = vmatprep.subr.mxu0 0.0
    %1013 = vmatpush1.msra.mxu0 0.0
    %1014 = vmatprep.subr.mxu0 0.0
    %1015 = vmatpush1.msra.mxu0 0.0
    %1016 = vmatprep.subr.mxu0 0.0
    %1017 = vmatpush1.msra.mxu0 0.0
    %1018 = vmatprep.mubr.f32.mxu0 0.0
    %1019 = vmatmul.mubr.f32.gmra.mrb[0].mxu0 %v952
    %v1020 = vpop.f32.mrb[0].mxu0
    %v1021 = vadd.f32 0.0, %v1020
    %v1022 = vpop.f32.mrb[0].mxu0
    %v1023 = vadd.f32 0.0, %v1022
    %1024 = vdwg.mxu0
    %v1025 = vadd.f32 %v1023, %v350
    %v1026 = vmul.f32 %v1025, %v52
    %v1027 = vtanh.pop %v1026
    %v1028 = vmul.f32 %v1027, %v52
    %v1029 = vadd.f32 %v1028, %v53
    %v1030 = vmul.f32 %v1029, %v872
    %1032 = vrot.lane.b32.xlu0 %v1029, 64
    %v1033 = vpop.permute.xlu0 %1032
    %v1035 = vmul.f32 %v1029, %v1033
    %1037 = vrot.lane.b32.xlu0 %v1035, 32
    %v1038 = vpop.permute.xlu0 %1037
    %v1040 = vadd.f32 %v1030, %v1038
    %v1041 = vtanh.pop %v1040
    %1043 = vrot.lane.b32.xlu0 %v1041, 64
    %v1044 = vpop.permute.xlu0 %1043
    %v1046 = vmul.f32 %v1029, %v1044
    %vm1047 = vcmp.gt.f32.partialorder %v881, %v45
    %v1048 = vsub.f32 %v1046, %v45
    %v1049 = vsel %vm1047, %v1048, %v1046
    %1051 = vrot.lane.b32.xlu0 %v1049, 96
    %v1052 = vpop.permute.xlu0 %1051
    %1054 = vst.msk [vmem:[#allocation2] sm:$0xff] %vm381, %v1052
    %v1055 = vmul.f32 %v1049, 0.12732719
    %v1056 = vadd.f32 %v888, %v1055
    %v1057 = vadd.f32 %v192, %v1021
    %v1058 = vmul.f32 %v1057, %v52
    %v1059 = vtanh.pop %v1058
    %v1060 = vmul.f32 %v1059, %v52
    %v1061 = vadd.f32 %v1060, %v53
    %v1062 = vmul.f32 %v1061, %v904
    %1064 = vrot.lane.b32.xlu0 %v1061, 64
    %v1065 = vpop.permute.xlu0 %1064
    %v1067 = vmul.f32 %v1061, %v1065
    %1069 = vrot.lane.b32.xlu0 %v1067, 32
    %v1070 = vpop.permute.xlu0 %1069
    %v1072 = vadd.f32 %v1062, %v1070
    %v1073 = vtanh.pop %v1072
    %1075 = vrot.lane.b32.xlu0 %v1073, 64
    %v1076 = vpop.permute.xlu0 %1075
    %v1078 = vmul.f32 %v1061, %v1076
    %v1079 = vsub.f32 %v1078, %v43
    %v1080 = vsel %vm913, %v1079, %v1078
    %vm1081 = vcmp.gt.f32.partialorder %v1080, %v43
    %v1082 = vsel %vm1081, 1, 0
    %v1083 = vcvt.s32.f32 %v1082
    %1085 = vrot.lane.b32.xlu0 %v1080, 32
    %v1086 = vpop.permute.xlu0 %1085
    %1088 = vst.msk [vmem:[#allocation2] sm:$0xff] %vm239, %v1086
    %1090 = vrot.lane.b32.xlu0 %v1083, 64
    %v1091 = vpop.permute.xlu0 %1090
    %1093 = vst.msk [vmem:[#allocation2] sm:$0xff] %vm245, %v1091
    %v1094 = vld [vmem:[#allocation2] sm:$0xff]
    %v1095 = vld [vmem:[%s3] sm:$0xff]
    %v1096 = vld [vmem:[%s3 + $0x8] sm:$0xff]
    %v1097 = vld [vmem:[%s3 + $0x10] sm:$0xff]
    %v1098 = vld [vmem:[%s3 + $0x18] sm:$0xff]
    %v1099 = vld [vmem:[%s3 + $0x20] sm:$0xff]
    %v1100 = vld [vmem:[%s3 + $0x28] sm:$0xff]
    %v1101 = vld [vmem:[%s3 + $0x30] sm:$0xff]
    %v1102 = vld [vmem:[%s3 + $0x38] sm:$0xff]
    %v1103 = vld [vmem:[%s3 + $0x40] sm:$0xff]
    %v1104 = vld [vmem:[%s3 + $0x48] sm:$0xff]
    %v1105 = vld [vmem:[%s3 + $0x50] sm:$0xff]
    %v1106 = vld [vmem:[%s3 + $0x58] sm:$0xff]
    %v1107 = vld [vmem:[%s3 + $0x60] sm:$0xff]
    %v1108 = vld [vmem:[%s3 + $0x68] sm:$0xff]
    %v1109 = vld [vmem:[%s3 + $0x70] sm:$0xff]
    %v1110 = vld [vmem:[%s3 + $0x78] sm:$0xff]
    %v1111 = vld [vmem:[%s3 + $0x80] sm:$0xff]
    %v1112 = vld [vmem:[%s3 + $0x88] sm:$0xff]
    %v1113 = vld [vmem:[%s3 + $0x90] sm:$0xff]
    %v1114 = vld [vmem:[%s3 + $0x98] sm:$0xff]
    %v1115 = vld [vmem:[%s3 + $0xa0] sm:$0xff]
    %v1116 = vld [vmem:[%s3 + $0xa8] sm:$0xff]
    %v1117 = vld [vmem:[%s3 + $0xb0] sm:$0xff]
    %v1118 = vld [vmem:[%s3 + $0xb8] sm:$0xff]
    %v1120 = vsel %vm205, %v1094, 0
    %1122 = vmatprep.subr.mxu0 %v1096
    %1123 = vmatpush1.msra.mxu0 %v1095
    %1124 = vmatprep.subr.mxu0 %v1098
    %1125 = vmatpush1.msra.mxu0 %v1097
    %1126 = vmatprep.subr.mxu0 %v1100
    %1127 = vmatpush1.msra.mxu0 %v1099
    %1128 = vmatprep.subr.mxu0 %v1102
    %1129 = vmatpush1.msra.mxu0 %v1101
    %1130 = vmatprep.subr.mxu0 %v1104
    %1131 = vmatpush1.msra.mxu0 %v1103
    %1132 = vmatprep.subr.mxu0 %v1106
    %1133 = vmatpush1.msra.mxu0 %v1105
    %1134 = vmatprep.subr.mxu0 %v1108
    %1135 = vmatpush1.msra.mxu0 %v1107
    %1136 = vmatprep.subr.mxu0 %v1110
    %1137 = vmatpush1.msra.mxu0 %v1109
    %1138 = vmatprep.subr.mxu0 %v1112
    %1139 = vmatpush1.msra.mxu0 %v1111
    %1140 = vmatprep.subr.mxu0 %v1114
    %1141 = vmatpush1.msra.mxu0 %v1113
    %1142 = vmatprep.subr.mxu0 %v1116
    %1143 = vmatpush1.msra.mxu0 %v1115
    %1144 = vmatprep.subr.mxu0 %v1118
    %1145 = vmatpush1.msra.mxu0 %v1117
    %1146 = vmatprep.subr.mxu0 0.0
    %1147 = vmatpush1.msra.mxu0 0.0
    %1148 = vmatprep.subr.mxu0 0.0
    %1149 = vmatpush1.msra.mxu0 0.0
    %1150 = vmatprep.subr.mxu0 0.0
    %1151 = vmatpush1.msra.mxu0 0.0
    %1152 = vmatprep.subr.mxu0 0.0
    %1153 = vmatpush1.msra.mxu0 0.0
    %1154 = vmatprep.subr.mxu0 0.0
    %1155 = vmatpush1.msra.mxu0 0.0
    %1156 = vmatprep.subr.mxu0 0.0
    %1157 = vmatpush1.msra.mxu0 0.0
    %1158 = vmatprep.subr.mxu0 0.0
    %1159 = vmatpush1.msra.mxu0 0.0
    %1160 = vmatprep.subr.mxu0 0.0
    %1161 = vmatpush1.msra.mxu0 0.0
    %1162 = vmatprep.subr.mxu0 0.0
    %1163 = vmatpush1.msra.mxu0 0.0
    %1164 = vmatprep.subr.mxu0 0.0
    %1165 = vmatpush1.msra.mxu0 0.0
    %1166 = vmatprep.subr.mxu0 0.0
    %1167 = vmatpush1.msra.mxu0 0.0
    %1168 = vmatprep.subr.mxu0 0.0
    %1169 = vmatpush1.msra.mxu0 0.0
    %1170 = vmatprep.subr.mxu0 0.0
    %1171 = vmatpush1.msra.mxu0 0.0
    %1172 = vmatprep.subr.mxu0 0.0
    %1173 = vmatpush1.msra.mxu0 0.0
    %1174 = vmatprep.subr.mxu0 0.0
    %1175 = vmatpush1.msra.mxu0 0.0
    %1176 = vmatprep.subr.mxu0 0.0
    %1177 = vmatpush1.msra.mxu0 0.0
    %1178 = vmatprep.subr.mxu0 0.0
    %1179 = vmatpush1.msra.mxu0 0.0
    %1180 = vmatprep.subr.mxu0 0.0
    %1181 = vmatpush1.msra.mxu0 0.0
    %1182 = vmatprep.subr.mxu0 0.0
    %1183 = vmatpush1.msra.mxu0 0.0
    %1184 = vmatprep.subr.mxu0 0.0
    %1185 = vmatpush1.msra.mxu0 0.0
    %1186 = vmatprep.mubr.f32.mxu0 0.0
    %1187 = vmatmul.mubr.f32.gmra.mrb[0].mxu0 %v1120
    %v1188 = vpop.f32.mrb[0].mxu0
    %v1189 = vadd.f32 0.0, %v1188
    %v1190 = vpop.f32.mrb[0].mxu0
    %v1191 = vadd.f32 0.0, %v1190
    %1192 = vdwg.mxu0
    %v1193 = vadd.f32 %v1191, %v350
    %v1194 = vmul.f32 %v1193, %v52
    %v1195 = vtanh.pop %v1194
    %v1196 = vmul.f32 %v1195, %v52
    %v1197 = vadd.f32 %v1196, %v53
    %v1198 = vmul.f32 %v1197, %v1040
    %1200 = vrot.lane.b32.xlu0 %v1197, 64
    %v1201 = vpop.permute.xlu0 %1200
    %v1203 = vmul.f32 %v1197, %v1201
    %1205 = vrot.lane.b32.xlu0 %v1203, 32
    %v1206 = vpop.permute.xlu0 %1205
    %v1208 = vadd.f32 %v1198, %v1206
    %v1209 = vtanh.pop %v1208
    %1211 = vrot.lane.b32.xlu0 %v1209, 64
    %v1212 = vpop.permute.xlu0 %1211
    %v1214 = vmul.f32 %v1197, %v1212
    %vm1215 = vcmp.gt.f32.partialorder %v1049, %v45
    %v1216 = vsub.f32 %v1214, %v45
    %v1217 = vsel %vm1215, %v1216, %v1214
    %1219 = vrot.lane.b32.xlu0 %v1217, 96
    %v1220 = vpop.permute.xlu0 %1219
    %1222 = vst.msk [vmem:[#allocation2] sm:$0xff] %vm381, %v1220
    %v1223 = vmul.f32 %v1217, 0.1338554
    %v1224 = vadd.f32 %v1056, %v1223
    %v1225 = vadd.f32 %v197, %v1189
    %v1226 = vmul.f32 %v1225, %v52
    %v1227 = vtanh.pop %v1226
    %v1228 = vmul.f32 %v1227, %v52
    %v1229 = vadd.f32 %v1228, %v53
    %v1230 = vmul.f32 %v1229, %v1072
    %1232 = vrot.lane.b32.xlu0 %v1229, 64
    %v1233 = vpop.permute.xlu0 %1232
    %v1235 = vmul.f32 %v1229, %v1233
    %1237 = vrot.lane.b32.xlu0 %v1235, 32
    %v1238 = vpop.permute.xlu0 %1237
    %v1240 = vadd.f32 %v1230, %v1238
    %v1241 = vtanh.pop %v1240
    %1243 = vrot.lane.b32.xlu0 %v1241, 64
    %v1244 = vpop.permute.xlu0 %1243
    %v1246 = vmul.f32 %v1229, %v1244
    %v1247 = vsub.f32 %v1246, %v43
    %v1248 = vsel %vm1081, %v1247, %v1246
    %vm1249 = vcmp.gt.f32.partialorder %v1248, %v43
    %v1250 = vsel %vm1249, 1, 0
    %v1251 = vcvt.s32.f32 %v1250
    %1253 = vrot.lane.b32.xlu0 %v1248, 32
    %v1254 = vpop.permute.xlu0 %1253
    %1256 = vst.msk [vmem:[#allocation2] sm:$0xff] %vm239, %v1254
    %1258 = vrot.lane.b32.xlu0 %v1251, 64
    %v1259 = vpop.permute.xlu0 %1258
    %1261 = vst.msk [vmem:[#allocation2] sm:$0xff] %vm245, %v1259
    %v1262 = vld [vmem:[#allocation2] sm:$0xff]
    %v1263 = vld [vmem:[%s3] sm:$0xff]
    %v1264 = vld [vmem:[%s3 + $0x8] sm:$0xff]
    %v1265 = vld [vmem:[%s3 + $0x10] sm:$0xff]
    %v1266 = vld [vmem:[%s3 + $0x18] sm:$0xff]
    %v1267 = vld [vmem:[%s3 + $0x20] sm:$0xff]
    %v1268 = vld [vmem:[%s3 + $0x28] sm:$0xff]
    %v1269 = vld [vmem:[%s3 + $0x30] sm:$0xff]
    %v1270 = vld [vmem:[%s3 + $0x38] sm:$0xff]
    %v1271 = vld [vmem:[%s3 + $0x40] sm:$0xff]
    %v1272 = vld [vmem:[%s3 + $0x48] sm:$0xff]
    %v1273 = vld [vmem:[%s3 + $0x50] sm:$0xff]
    %v1274 = vld [vmem:[%s3 + $0x58] sm:$0xff]
    %v1275 = vld [vmem:[%s3 + $0x60] sm:$0xff]
    %v1276 = vld [vmem:[%s3 + $0x68] sm:$0xff]
    %v1277 = vld [vmem:[%s3 + $0x70] sm:$0xff]
    %v1278 = vld [vmem:[%s3 + $0x78] sm:$0xff]
    %v1279 = vld [vmem:[%s3 + $0x80] sm:$0xff]
    %v1280 = vld [vmem:[%s3 + $0x88] sm:$0xff]
    %v1281 = vld [vmem:[%s3 + $0x90] sm:$0xff]
    %v1282 = vld [vmem:[%s3 + $0x98] sm:$0xff]
    %v1283 = vld [vmem:[%s3 + $0xa0] sm:$0xff]
    %v1284 = vld [vmem:[%s3 + $0xa8] sm:$0xff]
    %v1285 = vld [vmem:[%s3 + $0xb0] sm:$0xff]
    %v1286 = vld [vmem:[%s3 + $0xb8] sm:$0xff]
    %v1288 = vsel %vm205, %v1262, 0
    %1290 = vmatprep.subr.mxu0 %v1264
    %1291 = vmatpush1.msra.mxu0 %v1263
    %1292 = vmatprep.subr.mxu0 %v1266
    %1293 = vmatpush1.msra.mxu0 %v1265
    %1294 = vmatprep.subr.mxu0 %v1268
    %1295 = vmatpush1.msra.mxu0 %v1267
    %1296 = vmatprep.subr.mxu0 %v1270
    %1297 = vmatpush1.msra.mxu0 %v1269
    %1298 = vmatprep.subr.mxu0 %v1272
    %1299 = vmatpush1.msra.mxu0 %v1271
    %1300 = vmatprep.subr.mxu0 %v1274
    %1301 = vmatpush1.msra.mxu0 %v1273
    %1302 = vmatprep.subr.mxu0 %v1276
    %1303 = vmatpush1.msra.mxu0 %v1275
    %1304 = vmatprep.subr.mxu0 %v1278
    %1305 = vmatpush1.msra.mxu0 %v1277
    %1306 = vmatprep.subr.mxu0 %v1280
    %1307 = vmatpush1.msra.mxu0 %v1279
    %1308 = vmatprep.subr.mxu0 %v1282
    %1309 = vmatpush1.msra.mxu0 %v1281
    %1310 = vmatprep.subr.mxu0 %v1284
    %1311 = vmatpush1.msra.mxu0 %v1283
    %1312 = vmatprep.subr.mxu0 %v1286
    %1313 = vmatpush1.msra.mxu0 %v1285
    %1314 = vmatprep.subr.mxu0 0.0
    %1315 = vmatpush1.msra.mxu0 0.0
    %1316 = vmatprep.subr.mxu0 0.0
    %1317 = vmatpush1.msra.mxu0 0.0
    %1318 = vmatprep.subr.mxu0 0.0
    %1319 = vmatpush1.msra.mxu0 0.0
    %1320 = vmatprep.subr.mxu0 0.0
    %1321 = vmatpush1.msra.mxu0 0.0
    %1322 = vmatprep.subr.mxu0 0.0
    %1323 = vmatpush1.msra.mxu0 0.0
    %1324 = vmatprep.subr.mxu0 0.0
    %1325 = vmatpush1.msra.mxu0 0.0
    %1326 = vmatprep.subr.mxu0 0.0
    %1327 = vmatpush1.msra.mxu0 0.0
    %1328 = vmatprep.subr.mxu0 0.0
    %1329 = vmatpush1.msra.mxu0 0.0
    %1330 = vmatprep.subr.mxu0 0.0
    %1331 = vmatpush1.msra.mxu0 0.0
    %1332 = vmatprep.subr.mxu0 0.0
    %1333 = vmatpush1.msra.mxu0 0.0
    %1334 = vmatprep.subr.mxu0 0.0
    %1335 = vmatpush1.msra.mxu0 0.0
    %1336 = vmatprep.subr.mxu0 0.0
    %1337 = vmatpush1.msra.mxu0 0.0
    %1338 = vmatprep.subr.mxu0 0.0
    %1339 = vmatpush1.msra.mxu0 0.0
    %1340 = vmatprep.subr.mxu0 0.0
    %1341 = vmatpush1.msra.mxu0 0.0
    %1342 = vmatprep.subr.mxu0 0.0
    %1343 = vmatpush1.msra.mxu0 0.0
    %1344 = vmatprep.subr.mxu0 0.0
    %1345 = vmatpush1.msra.mxu0 0.0
    %1346 = vmatprep.subr.mxu0 0.0
    %1347 = vmatpush1.msra.mxu0 0.0
    %1348 = vmatprep.subr.mxu0 0.0
    %1349 = vmatpush1.msra.mxu0 0.0
    %1350 = vmatprep.subr.mxu0 0.0
    %1351 = vmatpush1.msra.mxu0 0.0
    %1352 = vmatprep.subr.mxu0 0.0
    %1353 = vmatpush1.msra.mxu0 0.0
    %1354 = vmatprep.mubr.f32.mxu0 0.0
    %1355 = vmatmul.mubr.f32.gmra.mrb[0].mxu0 %v1288
    %v1356 = vpop.f32.mrb[0].mxu0
    %v1357 = vadd.f32 0.0, %v1356
    %v1358 = vpop.f32.mrb[0].mxu0
    %v1359 = vadd.f32 0.0, %v1358
    %1360 = vdwg.mxu0
    %v1361 = vadd.f32 %v1359, %v350
    %v1362 = vmul.f32 %v1361, %v52
    %v1363 = vtanh.pop %v1362
    %v1364 = vmul.f32 %v1363, %v52
    %v1365 = vadd.f32 %v1364, %v53
    %v1366 = vmul.f32 %v1365, %v1208
    %1368 = vrot.lane.b32.xlu0 %v1365, 64
    %v1369 = vpop.permute.xlu0 %1368
    %v1371 = vmul.f32 %v1365, %v1369
    %1373 = vrot.lane.b32.xlu0 %v1371, 32
    %v1374 = vpop.permute.xlu0 %1373
    %v1376 = vadd.f32 %v1366, %v1374
    %v1377 = vtanh.pop %v1376
    %1379 = vrot.lane.b32.xlu0 %v1377, 64
    %v1380 = vpop.permute.xlu0 %1379
    %v1382 = vmul.f32 %v1365, %v1380
    %vm1383 = vcmp.gt.f32.partialorder %v1217, %v45
    %v1384 = vsub.f32 %v1382, %v45
    %v1385 = vsel %vm1383, %v1384, %v1382
    %1387 = vrot.lane.b32.xlu0 %v1385, 96
    %v1388 = vpop.permute.xlu0 %1387
    %1390 = vst.msk [vmem:[#allocation2] sm:$0xff] %vm381, %v1388
    %v1391 = vmul.f32 %v1385, 0.14071831
    %v1392 = vadd.f32 %v1224, %v1391
    %v1393 = vadd.f32 %v202, %v1357
    %v1394 = vmul.f32 %v1393, %v52
    %v1395 = vtanh.pop %v1394
    %v1396 = vmul.f32 %v1395, %v52
    %v1397 = vadd.f32 %v1396, %v53
    %v1398 = vmul.f32 %v1397, %v1240
    %1400 = vrot.lane.b32.xlu0 %v1397, 64
    %v1401 = vpop.permute.xlu0 %1400
    %v1403 = vmul.f32 %v1397, %v1401
    %1405 = vrot.lane.b32.xlu0 %v1403, 32
    %v1406 = vpop.permute.xlu0 %1405
    %v1408 = vadd.f32 %v1398, %v1406
    %v1409 = vtanh.pop %v1408
    %1411 = vrot.lane.b32.xlu0 %v1409, 64
    %v1412 = vpop.permute.xlu0 %1411
    %v1414 = vmul.f32 %v1397, %v1412
    %v1415 = vsub.f32 %v1414, %v43
    %v1416 = vsel %vm1249, %v1415, %v1414
    %vm1417 = vcmp.gt.f32.partialorder %v1416, %v43
    %v1418 = vsel %vm1417, 1, 0
    %v1419 = vcvt.s32.f32 %v1418
    %1421 = vrot.lane.b32.xlu0 %v1416, 32
    %v1422 = vpop.permute.xlu0 %1421
    %1424 = vst.msk [vmem:[#allocation2] sm:$0xff] %vm239, %v1422
    %1426 = vrot.lane.b32.xlu0 %v1419, 64
    %v1427 = vpop.permute.xlu0 %1426
    %1429 = vst.msk [vmem:[#allocation2] sm:$0xff] %vm245, %v1427
    %v1430 = vld [vmem:[#allocation2] sm:$0xff]
    %v1431 = vld [vmem:[%s3] sm:$0xff]
    %v1432 = vld [vmem:[%s3 + $0x8] sm:$0xff]
    %v1433 = vld [vmem:[%s3 + $0x10] sm:$0xff]
    %v1434 = vld [vmem:[%s3 + $0x18] sm:$0xff]
    %v1435 = vld [vmem:[%s3 + $0x20] sm:$0xff]
    %v1436 = vld [vmem:[%s3 + $0x28] sm:$0xff]
    %v1437 = vld [vmem:[%s3 + $0x30] sm:$0xff]
    %v1438 = vld [vmem:[%s3 + $0x38] sm:$0xff]
    %v1439 = vld [vmem:[%s3 + $0x40] sm:$0xff]
    %v1440 = vld [vmem:[%s3 + $0x48] sm:$0xff]
    %v1441 = vld [vmem:[%s3 + $0x50] sm:$0xff]
    %v1442 = vld [vmem:[%s3 + $0x58] sm:$0xff]
    %v1443 = vld [vmem:[%s3 + $0x60] sm:$0xff]
    %v1444 = vld [vmem:[%s3 + $0x68] sm:$0xff]
    %v1445 = vld [vmem:[%s3 + $0x70] sm:$0xff]
    %v1446 = vld [vmem:[%s3 + $0x78] sm:$0xff]
    %v1447 = vld [vmem:[%s3 + $0x80] sm:$0xff]
    %v1448 = vld [vmem:[%s3 + $0x88] sm:$0xff]
    %v1449 = vld [vmem:[%s3 + $0x90] sm:$0xff]
    %v1450 = vld [vmem:[%s3 + $0x98] sm:$0xff]
    %v1451 = vld [vmem:[%s3 + $0xa0] sm:$0xff]
    %v1452 = vld [vmem:[%s3 + $0xa8] sm:$0xff]
    %v1453 = vld [vmem:[%s3 + $0xb0] sm:$0xff]
    %v1454 = vld [vmem:[%s3 + $0xb8] sm:$0xff]
    %v1456 = vsel %vm205, %v1430, 0
    %1458 = vmatprep.subr.mxu0 %v1432
    %1459 = vmatpush1.msra.mxu0 %v1431
    %1460 = vmatprep.subr.mxu0 %v1434
    %1461 = vmatpush1.msra.mxu0 %v1433
    %1462 = vmatprep.subr.mxu0 %v1436
    %1463 = vmatpush1.msra.mxu0 %v1435
    %1464 = vmatprep.subr.mxu0 %v1438
    %1465 = vmatpush1.msra.mxu0 %v1437
    %1466 = vmatprep.subr.mxu0 %v1440
    %1467 = vmatpush1.msra.mxu0 %v1439
    %1468 = vmatprep.subr.mxu0 %v1442
    %1469 = vmatpush1.msra.mxu0 %v1441
    %1470 = vmatprep.subr.mxu0 %v1444
    %1471 = vmatpush1.msra.mxu0 %v1443
    %1472 = vmatprep.subr.mxu0 %v1446
    %1473 = vmatpush1.msra.mxu0 %v1445
    %1474 = vmatprep.subr.mxu0 %v1448
    %1475 = vmatpush1.msra.mxu0 %v1447
    %1476 = vmatprep.subr.mxu0 %v1450
    %1477 = vmatpush1.msra.mxu0 %v1449
    %1478 = vmatprep.subr.mxu0 %v1452
    %1479 = vmatpush1.msra.mxu0 %v1451
    %1480 = vmatprep.subr.mxu0 %v1454
    %1481 = vmatpush1.msra.mxu0 %v1453
    %1482 = vmatprep.subr.mxu0 0.0
    %1483 = vmatpush1.msra.mxu0 0.0
    %1484 = vmatprep.subr.mxu0 0.0
    %1485 = vmatpush1.msra.mxu0 0.0
    %1486 = vmatprep.subr.mxu0 0.0
    %1487 = vmatpush1.msra.mxu0 0.0
    %1488 = vmatprep.subr.mxu0 0.0
    %1489 = vmatpush1.msra.mxu0 0.0
    %1490 = vmatprep.subr.mxu0 0.0
    %1491 = vmatpush1.msra.mxu0 0.0
    %1492 = vmatprep.subr.mxu0 0.0
    %1493 = vmatpush1.msra.mxu0 0.0
    %1494 = vmatprep.subr.mxu0 0.0
    %1495 = vmatpush1.msra.mxu0 0.0
    %1496 = vmatprep.subr.mxu0 0.0
    %1497 = vmatpush1.msra.mxu0 0.0
    %1498 = vmatprep.subr.mxu0 0.0
    %1499 = vmatpush1.msra.mxu0 0.0
    %1500 = vmatprep.subr.mxu0 0.0
    %1501 = vmatpush1.msra.mxu0 0.0
    %1502 = vmatprep.subr.mxu0 0.0
    %1503 = vmatpush1.msra.mxu0 0.0
    %1504 = vmatprep.subr.mxu0 0.0
    %1505 = vmatpush1.msra.mxu0 0.0
    %1506 = vmatprep.subr.mxu0 0.0
    %1507 = vmatpush1.msra.mxu0 0.0
    %1508 = vmatprep.subr.mxu0 0.0
    %1509 = vmatpush1.msra.mxu0 0.0
    %1510 = vmatprep.subr.mxu0 0.0
    %1511 = vmatpush1.msra.mxu0 0.0
    %1512 = vmatprep.subr.mxu0 0.0
    %1513 = vmatpush1.msra.mxu0 0.0
    %1514 = vmatprep.subr.mxu0 0.0
    %1515 = vmatpush1.msra.mxu0 0.0
    %1516 = vmatprep.subr.mxu0 0.0
    %1517 = vmatpush1.msra.mxu0 0.0
    %1518 = vmatprep.subr.mxu0 0.0
    %1519 = vmatpush1.msra.mxu0 0.0
    %1520 = vmatprep.subr.mxu0 0.0
    %1521 = vmatpush1.msra.mxu0 0.0
    %1522 = vmatprep.mubr.f32.mxu0 0.0
    %1523 = vmatmul.mubr.f32.gmra.mrb[0].mxu0 %v1456
    %v1524 = vpop.f32.mrb[0].mxu0
    %v1525 = vpop.f32.mrb[0].mxu0
    %v1526 = vadd.f32 0.0, %v1525
    %1527 = vdwg.mxu0
    %v1528 = vadd.f32 %v1526, %v350
    %v1529 = vmul.f32 %v1528, %v52
    %v1530 = vtanh.pop %v1529
    %v1531 = vmul.f32 %v1530, %v52
    %v1532 = vadd.f32 %v1531, %v53
    %v1533 = vmul.f32 %v1532, %v1376
    %1535 = vrot.lane.b32.xlu0 %v1532, 64
    %v1536 = vpop.permute.xlu0 %1535
    %v1538 = vmul.f32 %v1532, %v1536
    %1540 = vrot.lane.b32.xlu0 %v1538, 32
    %v1541 = vpop.permute.xlu0 %1540
    %v1543 = vadd.f32 %v1533, %v1541
    %v1544 = vtanh.pop %v1543
    %1546 = vrot.lane.b32.xlu0 %v1544, 64
    %v1547 = vpop.permute.xlu0 %1546
    %v1549 = vmul.f32 %v1532, %v1547
    %vm1550 = vcmp.gt.f32.partialorder %v1385, %v45
    %v1551 = vsub.f32 %v1549, %v45
    %v1552 = vsel %vm1550, %v1551, %v1549
    %1554 = vrot.lane.b32.xlu0 %v1552, 96
    %v1555 = vpop.permute.xlu0 %1554
    %1557 = vst.msk [vmem:[#allocation2] sm:$0xff] %vm381, %v1555
    %v1558 = vmul.f32 %v1552, 0.1479331
    %v1559 = vadd.f32 %v1392, %v1558
    %v1560 = vld [vmem:[%s5] sm:$0xff]
    %v1561 = vld [vmem:[%s5 + $0x8] sm:$0xff]
    %v1562 = vld [vmem:[%s5 + $0x10] sm:$0xff]
    %v1563 = vld [vmem:[%s5 + $0x18] sm:$0xff]
    %v1564 = vld [vmem:[%s6] sm:$0x1]
    %v1566 = vlaneseq
    %v1567 = vshrl.u32 %v1566, 7
    %v1568 = vsub.s32 0, %v1567
    %v1569 = vrot.slane %v1564, %v1568
    %1572 = vrot.lane.b32.xlu0 %v1559, 32
    %v1573 = vpop.permute.xlu0 %1572
    %v1574 = vsel %vm239, %v1573, 0
    %1576 = vmatprep.subr.mxu0 0.0
    %1577 = vmatpush1.msra.mxu0 %v1560
    %1578 = vmatprep.subr.mxu0 0.0
    %1579 = vmatpush1.msra.mxu0 %v1561
    %1580 = vmatprep.subr.mxu0 0.0
    %1581 = vmatpush1.msra.mxu0 %v1562
    %1582 = vmatprep.subr.mxu0 0.0
    %1583 = vmatpush1.msra.mxu0 %v1563
    %1584 = vmatprep.subr.mxu0 0.0
    %1585 = vmatpush1.msra.mxu0 0.0
    %1586 = vmatprep.subr.mxu0 0.0
    %1587 = vmatpush1.msra.mxu0 0.0
    %1588 = vmatprep.subr.mxu0 0.0
    %1589 = vmatpush1.msra.mxu0 0.0
    %1590 = vmatprep.subr.mxu0 0.0
    %1591 = vmatpush1.msra.mxu0 0.0
    %1592 = vmatprep.subr.mxu0 0.0
    %1593 = vmatpush1.msra.mxu0 0.0
    %1594 = vmatprep.subr.mxu0 0.0
    %1595 = vmatpush1.msra.mxu0 0.0
    %1596 = vmatprep.subr.mxu0 0.0
    %1597 = vmatpush1.msra.mxu0 0.0
    %1598 = vmatprep.subr.mxu0 0.0
    %1599 = vmatpush1.msra.mxu0 0.0
    %1600 = vmatprep.subr.mxu0 0.0
    %1601 = vmatpush1.msra.mxu0 0.0
    %1602 = vmatprep.subr.mxu0 0.0
    %1603 = vmatpush1.msra.mxu0 0.0
    %1604 = vmatprep.subr.mxu0 0.0
    %1605 = vmatpush1.msra.mxu0 0.0
    %1606 = vmatprep.subr.mxu0 0.0
    %1607 = vmatpush1.msra.mxu0 0.0
    %1608 = vmatprep.subr.mxu0 0.0
    %1609 = vmatpush1.msra.mxu0 0.0
    %1610 = vmatprep.subr.mxu0 0.0
    %1611 = vmatpush1.msra.mxu0 0.0
    %1612 = vmatprep.subr.mxu0 0.0
    %1613 = vmatpush1.msra.mxu0 0.0
    %1614 = vmatprep.subr.mxu0 0.0
    %1615 = vmatpush1.msra.mxu0 0.0
    %1616 = vmatprep.subr.mxu0 0.0
    %1617 = vmatpush1.msra.mxu0 0.0
    %1618 = vmatprep.subr.mxu0 0.0
    %1619 = vmatpush1.msra.mxu0 0.0
    %1620 = vmatprep.subr.mxu0 0.0
    %1621 = vmatpush1.msra.mxu0 0.0
    %1622 = vmatprep.subr.mxu0 0.0
    %1623 = vmatpush1.msra.mxu0 0.0
    %1624 = vmatprep.subr.mxu0 0.0
    %1625 = vmatpush1.msra.mxu0 0.0
    %1626 = vmatprep.subr.mxu0 0.0
    %1627 = vmatpush1.msra.mxu0 0.0
    %1628 = vmatprep.subr.mxu0 0.0
    %1629 = vmatpush1.msra.mxu0 0.0
    %1630 = vmatprep.subr.mxu0 0.0
    %1631 = vmatpush1.msra.mxu0 0.0
    %1632 = vmatprep.subr.mxu0 0.0
    %1633 = vmatpush1.msra.mxu0 0.0
    %1634 = vmatprep.subr.mxu0 0.0
    %1635 = vmatpush1.msra.mxu0 0.0
    %1636 = vmatprep.subr.mxu0 0.0
    %1637 = vmatpush1.msra.mxu0 0.0
    %1638 = vmatprep.subr.mxu0 0.0
    %1639 = vmatpush1.msra.mxu0 0.0
    %1640 = vmatprep.mubr.f32.mxu0 0.0
    %1641 = vmatmul.mubr.f32.gmra.mrb[0].mxu0 %v1574
    %v1642 = vpop.f32.mrb[0].mxu0
    %v1643 = vadd.f32 %v1569, %v1642
    %v1644 = vpop.f32.mrb[0].mxu0
    %1645 = vdwg.mxu0
    %1646 = vst [vmem:[%s8] sm:$0xff] %v1643
    // Predicated region
    $region38: #{net_slstm_tempatten.1} parent=1 // pred_check
      _
    $region39: #{net_slstm_tempatten.1} parent=1 // pred_check_branch
      %1648 = sbr.rel (0) target = $region41
    $region40: #{net_slstm_tempatten.1} parent=1 // pred_region
      _
    $region41: #{net_slstm_tempatten.1} parent=1 // pred_fallthru
      _
    // Predicated region
    $region42: #{net_slstm_tempatten.1} parent=1 // pred_check
      _
    $region43: #{net_slstm_tempatten.1} parent=1 // pred_check_branch
      %1650 = sbr.rel (0) target = $region45
    $region44: #{net_slstm_tempatten.1} parent=1 // pred_region
      _
    $region45: #{net_slstm_tempatten.1} parent=1 // pred_fallthru
      _
    %1651 = vsyncpa [#allocation4], 1

</llo_original>
